<compile_context>
chip_gen: v6e
topology: v6e:2x2x1
jax: 0.10.0
libtpu: 0.0.40
codegen_flags: <defaults>
</compile_context>

<pallas_src>
import functools
import math

import jax
import jax.numpy as jnp
from jax import lax
from jax.experimental import pallas as pl
from jax.experimental.pallas import tpu as pltpu

_NEG_INF = -1e30                 # large finite mask value (robust vs true -inf)
_WEIGHT_DTYPE = jnp.bfloat16     # MXU-native input dtype; accumulate in f32


# ------------------------------ helpers (traced) -----------------------------

def _layer_norm(x, g, b, eps=1e-5):
    # x: [S, D] f32, g/b: [1, D]; normalize over last dim (matches PyTorch LN).
    mean = jnp.mean(x, axis=-1, keepdims=True)
    var = jnp.mean(jnp.square(x - mean), axis=-1, keepdims=True)
    return (x - mean) * lax.rsqrt(var + eps) * g + b


def _mha_causal(qkv, num_heads, head_dim, allowed):
    """Multi-head causal attention on one sequence.

    qkv: [S, 3*D] f32 (scale already folded into Q at init).
    Returns the merged-head context [S, D] f32.
    """
    S = qkv.shape[0]
    H, Dh = num_heads, head_dim
    D = H * Dh

    if hasattr(pltpu, "einshape"):
        # Single head-major relayout, then one batched contraction over heads
        # for scores and one for PV (leading batch dim -> MXU-friendly form).
        t = pltpu.einshape("sgd->gsd", qkv.reshape(S, 3 * H, Dh))   # [3H, S, Dh]
        t = t.astype(jnp.bfloat16)
        q, k, v = t[:H], t[H:2 * H], t[2 * H:]                      # [H, S, Dh]
        s = jnp.einsum("hqd,hkd->hqk", q, k,
                       preferred_element_type=jnp.float32)          # [H, S, S]
        s = jnp.where(allowed[None], s, _NEG_INF)
        s = s - jnp.max(s, axis=-1, keepdims=True)
        p = jnp.exp(s)
        p = p / jnp.sum(p, axis=-1, keepdims=True)                  # exact softmax
        ctx = jnp.einsum("hqk,hkd->hqd", p.astype(jnp.bfloat16), v,
                         preferred_element_type=jnp.float32)        # [H, S, Dh]
        return pltpu.einshape("hsd->shd", ctx).reshape(S, D)        # [S, D]

    # Fallback (only if einshape is unavailable in this JAX build): per-head
    # 2-D dots, known-good lowering path.
    outs = []
    for h in range(H):
        q_h = qkv[:, h * Dh:(h + 1) * Dh].astype(jnp.bfloat16)
        k_h = qkv[:, D + h * Dh:D + (h + 1) * Dh].astype(jnp.bfloat16)
        v_h = qkv[:, 2 * D + h * Dh:2 * D + (h + 1) * Dh].astype(jnp.bfloat16)
        s = lax.dot_general(q_h, k_h, (((1,), (1,)), ((), ())),
                            preferred_element_type=jnp.float32)
        s = jnp.where(allowed, s, _NEG_INF)
        s = s - jnp.max(s, axis=-1, keepdims=True)
        p = jnp.exp(s)
        p = p / jnp.sum(p, axis=-1, keepdims=True)
        outs.append(jnp.dot(p.astype(jnp.bfloat16), v_h,
                            preferred_element_type=jnp.float32))
    return jnp.concatenate(outs, axis=-1)


# ------------------------- fused decoder-layer kernel ------------------------

def _decoder_layer_kernel(x_ref, wqkv_ref, bqkv_ref, wo_ref, bo_ref,
                          w1_ref, b1_ref, w2_ref, b2_ref,
                          ln1g_ref, ln1b_ref, ln2g_ref, ln2b_ref,
                          o_ref, *, num_heads):
    # One batch element per grid step; the whole layer stays in VMEM/vregs.
    x = x_ref[0].astype(jnp.float32)                        # [S, D]
    S, D = x.shape
    Dh = D // num_heads

    # ---- fused QKV projection: single [S, D] @ [D, 3D] bf16 matmul ----
    qkv = jnp.dot(x.astype(wqkv_ref.dtype), wqkv_ref[...],
                  preferred_element_type=jnp.float32) + bqkv_ref[...]   # [S, 3D]

    # ---- causal mask generated in-kernel (zero HBM traffic) ----
    row = lax.broadcasted_iota(jnp.int32, (S, S), 0)
    col = lax.broadcasted_iota(jnp.int32, (S, S), 1)
    allowed = row >= col                                    # j <= i

    # ---- multi-head causal attention, heads batched in one dot_general ----
    attn = _mha_causal(qkv, num_heads, Dh, allowed)         # [S, D]

    # ---- output projection + residual + LayerNorm (fused epilogue) ----
    attn = jnp.dot(attn.astype(wo_ref.dtype), wo_ref[...],
                   preferred_element_type=jnp.float32) + bo_ref[...]
    h1 = _layer_norm(x + attn, ln1g_ref[...], ln1b_ref[...])

    # ---- FFN (ReLU) + residual + LayerNorm, all in VMEM ----
    ff = jnp.dot(h1.astype(w1_ref.dtype), w1_ref[...],
                 preferred_element_type=jnp.float32) + b1_ref[...]
    ff = jnp.maximum(ff, 0.0)
    ff = jnp.dot(ff.astype(w2_ref.dtype), w2_ref[...],
                 preferred_element_type=jnp.float32) + b2_ref[...]
    h2 = _layer_norm(h1 + ff, ln2g_ref[...], ln2b_ref[...])

    o_ref[0] = h2.astype(o_ref.dtype)


def fused_decoder_layer(x, p, *, num_heads):
    B, S, D = x.shape
    Dff = p["w1"].shape[1]

    # Only single-buffer the constant-index weight blocks (and raise the VMEM
    # limit) when the weights are big enough for it to matter; at toy sizes we
    # keep the plain, default-pipelined specs.
    weight_bytes = sum(int(v.size) * v.dtype.itemsize for v in p.values())
    single_buffer = weight_bytes >= (4 << 20)

    def const_spec(shape):
        index_map = lambda b: tuple(0 for _ in shape)
        if single_buffer and hasattr(pl, "Buffered"):
            try:
                return pl.BlockSpec(shape, index_map,
                                    pipeline_mode=pl.Buffered(1))
            except TypeError:   # pipeline_mode not available in this build
                pass
        return pl.BlockSpec(shape, index_map)

    in_specs = [
        pl.BlockSpec((1, S, D), lambda b: (b, 0, 0)),       # x
        const_spec((D, 3 * D)),                             # wqkv (bf16)
        const_spec((1, 3 * D)),                             # bqkv
        const_spec((D, D)),                                 # wo   (bf16)
        const_spec((1, D)),                                 # bo
        const_spec((D, Dff)),                               # w1   (bf16)
        const_spec((1, Dff)),                               # b1
        const_spec((Dff, D)),                               # w2   (bf16)
        const_spec((1, D)),                                 # b2
        const_spec((1, D)),                                 # ln1_g
        const_spec((1, D)),                                 # ln1_b
        const_spec((1, D)),                                 # ln2_g
        const_spec((1, D)),                                 # ln2_b
    ]

    compiler_kwargs = dict(dimension_semantics=("parallel",))
    if single_buffer:
        # Explicit VMEM budget once the resident set grows beyond defaults.
        compiler_kwargs["vmem_limit_bytes"] = 64 * 1024 * 1024

    return pl.pallas_call(
        functools.partial(_decoder_layer_kernel, num_heads=num_heads),
        out_shape=jax.ShapeDtypeStruct((B, S, D), x.dtype),
        grid=(B,),
        in_specs=in_specs,
        out_specs=pl.BlockSpec((1, S, D), lambda b: (b, 0, 0)),
        compiler_params=pltpu.CompilerParams(**compiler_kwargs),
    )(x, p["wqkv"], p["bqkv"], p["wo"], p["bo"],
      p["w1"], p["b1"], p["w2"], p["b2"],
      p["ln1_g"], p["ln1_b"], p["ln2_g"], p["ln2_b"])


# ----------------------- tiled linear (output projection) --------------------

def _matmul_bias_kernel(x_ref, w_ref, b_ref, o_ref, acc_ref):
    @pl.when(pl.program_id(2) == 0)
    def _():
        acc_ref[...] = jnp.zeros_like(acc_ref)

    acc_ref[...] += jnp.dot(x_ref[...].astype(w_ref.dtype), w_ref[...],
                            preferred_element_type=jnp.float32)

    @pl.when(pl.program_id(2) == pl.num_programs(2) - 1)
    def _():
        o_ref[...] = (acc_ref[...] + b_ref[...]).astype(o_ref.dtype)


def pallas_linear(x, w, b, *, tm=256, tn=512, tk=512):
    """x: [M, K] f32 activations; w: [K, N] bf16 (N padded to 128 at init);
    b: [N] f32.  Handles non-divisible dims by zero padding (exact)."""
    M, K = x.shape
    N = w.shape[1]
    tm, tn, tk = min(tm, M), min(tn, N), min(tk, K)
    Mp = pl.cdiv(M, tm) * tm
    Kp = pl.cdiv(K, tk) * tk
    Np = pl.cdiv(N, tn) * tn
    if (Mp, Kp) != (M, K):
        x = jnp.pad(x, ((0, Mp - M), (0, Kp - K)))
    if (Kp, Np) != (K, N):
        w = jnp.pad(w, ((0, Kp - K), (0, Np - N)))
    if Np != N:
        b = jnp.pad(b, (0, Np - N))
    grid = (Mp // tm, Np // tn, Kp // tk)
    out = pl.pallas_call(
        _matmul_bias_kernel,
        out_shape=jax.ShapeDtypeStruct((Mp, Np), x.dtype),
        grid=grid,
        in_specs=[pl.BlockSpec((tm, tk), lambda i, j, k: (i, k)),
                  pl.BlockSpec((tk, tn), lambda i, j, k: (k, j)),
                  pl.BlockSpec((1, tn), lambda i, j, k: (0, j))],
        out_specs=pl.BlockSpec((tm, tn), lambda i, j, k: (i, j)),
        scratch_shapes=[pltpu.VMEM((tm, tn), jnp.float32)],
        compiler_params=pltpu.CompilerParams(
            dimension_semantics=("parallel", "parallel", "arbitrary")),
    )(x, w, b.reshape(1, Np))
    if (Mp, Np) != (M, N):
        out = out[:M, :N]
    return out


# --------------------------- model (decoder-only) ----------------------------

def sinusoidal_positional_encoding(max_len, d_model):
    pos = jnp.arange(max_len, dtype=jnp.float32)[:, None]
    div = jnp.exp(jnp.arange(0, d_model, 2, dtype=jnp.float32)
                  * (-math.log(10000.0) / d_model))
    pe = jnp.zeros((max_len, d_model), dtype=jnp.float32)
    pe = pe.at[:, 0::2].set(jnp.sin(pos * div))
    pe = pe.at[:, 1::2].set(jnp.cos(pos * div))
    return pe


def xavier_uniform(key, fan_in, fan_out, shape=None):
    if shape is None:
        shape = (fan_in, fan_out)
    limit = math.sqrt(6.0 / (fan_in + fan_out))
    return jax.random.uniform(key, shape, jnp.float32, -limit, limit)


def init_params(key, vocab_size, d_model, num_heads, d_ff, num_layers, pad_idx):
    keys = iter(jax.random.split(key, 6 * num_layers + 2))
    emb = xavier_uniform(next(keys), vocab_size, d_model, (vocab_size, d_model))
    emb = emb.at[pad_idx].set(0.0)                         # padding_idx row zero
    scale = 1.0 / math.sqrt(d_model // num_heads)
    layers = []
    for _ in range(num_layers):
        wq = xavier_uniform(next(keys), d_model, d_model) * scale   # scale folded
        wk = xavier_uniform(next(keys), d_model, d_model)
        wv = xavier_uniform(next(keys), d_model, d_model)
        layers.append(dict(
            wqkv=jnp.concatenate([wq, wk, wv], axis=1).astype(_WEIGHT_DTYPE),
            bqkv=jnp.zeros((1, 3 * d_model), jnp.float32),
            wo=xavier_uniform(next(keys), d_model, d_model).astype(_WEIGHT_DTYPE),
            bo=jnp.zeros((1, d_model), jnp.float32),
            w1=xavier_uniform(next(keys), d_model, d_ff).astype(_WEIGHT_DTYPE),
            b1=jnp.zeros((1, d_ff), jnp.float32),
            w2=xavier_uniform(next(keys), d_ff, d_model).astype(_WEIGHT_DTYPE),
            b2=jnp.zeros((1, d_model), jnp.float32),
            ln1_g=jnp.ones((1, d_model), jnp.float32),
            ln1_b=jnp.zeros((1, d_model), jnp.float32),
            ln2_g=jnp.ones((1, d_model), jnp.float32),
            ln2_b=jnp.zeros((1, d_model), jnp.float32),
        ))
    # Output projection: pad vocab up to a multiple of 128 once at init so the
    # matmul kernel's output tiles are lane-dense (unmasked stores).
    vocab_padded = ((vocab_size + 127) // 128) * 128
    w_out = xavier_uniform(next(keys), d_model, vocab_size)        # [D, vocab]
    w_out = jnp.pad(w_out, ((0, 0), (0, vocab_padded - vocab_size)))
    b_out = jnp.zeros((vocab_padded,), jnp.float32)
    return dict(embedding=emb, layers=layers,
                w_out=w_out.astype(_WEIGHT_DTYPE), b_out=b_out)


def transformer_decoder_only_forward(params, tgt, *, num_heads, pe_table):
    """tgt: [B, S] int32 token ids -> logits [B, S, vocab]."""
    B, S = tgt.shape
    vocab, D = params["embedding"].shape
    # Embedding lookup + positional encoding kept as cheap JAX glue.
    x = jnp.take(params["embedding"], tgt, axis=0)         # [B, S, D]
    x = x + pe_table[None, :S, :]
    for p in params["layers"]:
        x = fused_decoder_layer(x, p, num_heads=num_heads)
    logits = pallas_linear(x.reshape(B * S, D), params["w_out"], params["b_out"])
    return logits[:, :vocab].reshape(B, S, vocab)


# ---------------------------------- main -------------------------------------

if __name__ == "__main__":
    # Small config (decoder_only): vocab=50, d_model=32, heads=4, d_ff=64,
    # num_decoder_layers=2, max_seq_length=16, dropout=0, pad_idx=0.
    VOCAB, D_MODEL, N_HEADS, D_FF, N_LAYERS = 50, 32, 4, 64, 2
    MAX_LEN, PAD_IDX = 16, 0
    B, S = 2, 8

    key = jax.random.PRNGKey(0)
    k_param, k_tok = jax.random.split(key)
    params = init_params(k_param, VOCAB, D_MODEL, N_HEADS, D_FF, N_LAYERS, PAD_IDX)
    pe_table = sinusoidal_positional_encoding(MAX_LEN, D_MODEL)

    tgt = jax.random.randint(k_tok, (B, S), 1, VOCAB, dtype=jnp.int32)

    fwd = jax.jit(functools.partial(transformer_decoder_only_forward,
                                    num_heads=N_HEADS, pe_table=pe_table))
    logits = fwd(params, tgt)
    jax.block_until_ready(logits)
    assert logits.shape == (B, S, VOCAB)
    assert bool(jnp.all(jnp.isfinite(logits)))
    print("KERNEL_OK")
</pallas_src>

<mosaic_0001>
module attributes {stable_mosaic.version = 11 : i64} {
  func.func @_decoder_layer_kernel(%arg0: i32, %arg1: memref<1x8x32xf32, #tpu.memory_space<vmem>>, %arg2: memref<32x96xbf16, #tpu.memory_space<vmem>>, %arg3: memref<1x96xf32, #tpu.memory_space<vmem>>, %arg4: memref<32x32xbf16, #tpu.memory_space<vmem>>, %arg5: memref<1x32xf32, #tpu.memory_space<vmem>>, %arg6: memref<32x64xbf16, #tpu.memory_space<vmem>>, %arg7: memref<1x64xf32, #tpu.memory_space<vmem>>, %arg8: memref<64x32xbf16, #tpu.memory_space<vmem>>, %arg9: memref<1x32xf32, #tpu.memory_space<vmem>>, %arg10: memref<1x32xf32, #tpu.memory_space<vmem>>, %arg11: memref<1x32xf32, #tpu.memory_space<vmem>>, %arg12: memref<1x32xf32, #tpu.memory_space<vmem>>, %arg13: memref<1x32xf32, #tpu.memory_space<vmem>>, %arg14: memref<1x8x32xf32, #tpu.memory_space<vmem>>) attributes {dimension_semantics = [#tpu.dimension_semantics<parallel>], iteration_bounds = array<i64: 2>, scalar_prefetch = 0 : i64, scratch_operands = 0 : i64, tpu.core_type = #tpu.core_type<tc>, window_params = [{transform_indices = @transform_0, window_bounds = array<i64: 1, 8, 32>}, {pipeline_mode = #tpu.pipeline_mode<synchronous>, transform_indices = @transform_1, window_bounds = array<i64: 32, 96>}, {pipeline_mode = #tpu.pipeline_mode<synchronous>, transform_indices = @transform_2, window_bounds = array<i64: 1, 96>}, {pipeline_mode = #tpu.pipeline_mode<synchronous>, transform_indices = @transform_3, window_bounds = array<i64: 32, 32>}, {pipeline_mode = #tpu.pipeline_mode<synchronous>, transform_indices = @transform_4, window_bounds = array<i64: 1, 32>}, {pipeline_mode = #tpu.pipeline_mode<synchronous>, transform_indices = @transform_5, window_bounds = array<i64: 32, 64>}, {pipeline_mode = #tpu.pipeline_mode<synchronous>, transform_indices = @transform_6, window_bounds = array<i64: 1, 64>}, {pipeline_mode = #tpu.pipeline_mode<synchronous>, transform_indices = @transform_7, window_bounds = array<i64: 64, 32>}, {pipeline_mode = #tpu.pipeline_mode<synchronous>, transform_indices = @transform_8, window_bounds = array<i64: 1, 32>}, {pipeline_mode = #tpu.pipeline_mode<synchronous>, transform_indices = @transform_9, window_bounds = array<i64: 1, 32>}, {pipeline_mode = #tpu.pipeline_mode<synchronous>, transform_indices = @transform_10, window_bounds = array<i64: 1, 32>}, {pipeline_mode = #tpu.pipeline_mode<synchronous>, transform_indices = @transform_11, window_bounds = array<i64: 1, 32>}, {pipeline_mode = #tpu.pipeline_mode<synchronous>, transform_indices = @transform_12, window_bounds = array<i64: 1, 32>}, {transform_indices = @transform_13, window_bounds = array<i64: 1, 8, 32>}]} {
    %c0 = arith.constant 0 : index
    %c0_0 = arith.constant 0 : index
    %c0_1 = arith.constant 0 : index
    %0 = vector.load %arg1[%c0, %c0_0, %c0_1] : memref<1x8x32xf32, #tpu.memory_space<vmem>>, vector<1x8x32xf32>
    %1 = vector.shape_cast %0 : vector<1x8x32xf32> to vector<8x32xf32>
    %2 = arith.truncf %1 : vector<8x32xf32> to vector<8x32xbf16>
    %c0_2 = arith.constant 0 : index
    %c0_3 = arith.constant 0 : index
    %3 = vector.load %arg2[%c0_2, %c0_3] : memref<32x96xbf16, #tpu.memory_space<vmem>>, vector<32x96xbf16>
    %cst = arith.constant dense<0.000000e+00> : vector<8x96xf32>
    %4 = tpu.matmul %2, %3, %cst {dimension_numbers = #tpu.dot_dimension_numbers<[1], [0], [0], [1], [0, 0, 1, 1], [], []>} : vector<8x32xbf16>, vector<32x96xbf16>, vector<8x96xf32> -> vector<8x96xf32>
    %c0_4 = arith.constant 0 : index
    %c0_5 = arith.constant 0 : index
    %5 = vector.load %arg3[%c0_4, %c0_5] : memref<1x96xf32, #tpu.memory_space<vmem>>, vector<1x96xf32>
    %6 = vector.broadcast %5 : vector<1x96xf32> to vector<8x96xf32>
    %7 = arith.addf %4, %6 : vector<8x96xf32>
    %8 = tpu.iota {dimensions = array<i32: 0>} : vector<8x8xi32>
    %9 = tpu.iota {dimensions = array<i32: 1>} : vector<8x8xi32>
    %10 = arith.cmpi sge, %8, %9 : vector<8x8xi32>
    %11 = vector.shape_cast %7 : vector<8x96xf32> to vector<8x12x8xf32>
    %12 = tpu.transpose %11, [1, 0, 2] : vector<8x12x8xf32> -> vector<12x8x8xf32>
    %13 = arith.truncf %12 : vector<12x8x8xf32> to vector<12x8x8xbf16>
    %14 = vector.extract_strided_slice %13 {offsets = [0, 0, 0], sizes = [4, 8, 8], strides = [1, 1, 1]} : vector<12x8x8xbf16> to vector<4x8x8xbf16>
    %15 = vector.extract_strided_slice %13 {offsets = [4, 0, 0], sizes = [4, 8, 8], strides = [1, 1, 1]} : vector<12x8x8xbf16> to vector<4x8x8xbf16>
    %16 = vector.extract_strided_slice %13 {offsets = [8, 0, 0], sizes = [4, 8, 8], strides = [1, 1, 1]} : vector<12x8x8xbf16> to vector<4x8x8xbf16>
    "tpu.trace_start"() <{level = 10 : i32, message = "hqd,hkd->hqk"}> : () -> ()
    %cst_6 = arith.constant dense<0.000000e+00> : vector<4x8x8xf32>
    %17 = tpu.matmul %14, %15, %cst_6 {dimension_numbers = #tpu.dot_dimension_numbers<[2], [2], [1], [1], [0, 0, 0, 1, 1, 1], [0], [0]>} : vector<4x8x8xbf16>, vector<4x8x8xbf16>, vector<4x8x8xf32> -> vector<4x8x8xf32>
    "tpu.trace_stop"() : () -> ()
    %18 = vector.shape_cast %10 : vector<8x8xi1> to vector<1x8x8xi1>
    %cst_7 = arith.constant -1.000000e+30 : f32
    %19 = vector.shape_cast %18 : vector<1x8x8xi1> to vector<1x8x8xi1>
    %20 = vector.broadcast %19 : vector<1x8x8xi1> to vector<4x8x8xi1>
    %21 = vector.broadcast %cst_7 : f32 to vector<4x8x8xf32>
    %22 = arith.select %20, %17, %21 : vector<4x8x8xi1>, vector<4x8x8xf32>
    %cst_8 = arith.constant dense<0xFF800000> : vector<4x8xf32>
    %23 = vector.multi_reduction <maximumf>, %22, %cst_8 [2] : vector<4x8x8xf32> to vector<4x8xf32>
    %24 = vector.shape_cast %23 : vector<4x8xf32> to vector<4x8x1xf32>
    %25 = vector.broadcast %24 : vector<4x8x1xf32> to vector<4x8x8xf32>
    %26 = arith.subf %22, %25 : vector<4x8x8xf32>
    %27 = math.exp %26 : vector<4x8x8xf32>
    %cst_9 = arith.constant dense<0.000000e+00> : vector<4x8xf32>
    %28 = vector.multi_reduction <add>, %27, %cst_9 [2] : vector<4x8x8xf32> to vector<4x8xf32>
    %29 = vector.shape_cast %28 : vector<4x8xf32> to vector<4x8x1xf32>
    %30 = vector.broadcast %29 : vector<4x8x1xf32> to vector<4x8x8xf32>
    %31 = arith.divf %27, %30 : vector<4x8x8xf32>
    %32 = arith.truncf %31 : vector<4x8x8xf32> to vector<4x8x8xbf16>
    "tpu.trace_start"() <{level = 10 : i32, message = "hqk,hkd->hqd"}> : () -> ()
    %cst_10 = arith.constant dense<0.000000e+00> : vector<4x8x8xf32>
    %33 = tpu.matmul %32, %16, %cst_10 {dimension_numbers = #tpu.dot_dimension_numbers<[2], [1], [1], [2], [0, 0, 0, 1, 1, 2], [0], [0]>} : vector<4x8x8xbf16>, vector<4x8x8xbf16>, vector<4x8x8xf32> -> vector<4x8x8xf32>
    "tpu.trace_stop"() : () -> ()
    %34 = tpu.transpose %33, [1, 0, 2] : vector<4x8x8xf32> -> vector<8x4x8xf32>
    %35 = vector.shape_cast %34 : vector<8x4x8xf32> to vector<8x32xf32>
    %36 = arith.truncf %35 : vector<8x32xf32> to vector<8x32xbf16>
    %c0_11 = arith.constant 0 : index
    %c0_12 = arith.constant 0 : index
    %37 = vector.load %arg4[%c0_11, %c0_12] : memref<32x32xbf16, #tpu.memory_space<vmem>>, vector<32x32xbf16>
    %cst_13 = arith.constant dense<0.000000e+00> : vector<8x32xf32>
    %38 = tpu.matmul %36, %37, %cst_13 {dimension_numbers = #tpu.dot_dimension_numbers<[1], [0], [0], [1], [0, 0, 1, 1], [], []>} : vector<8x32xbf16>, vector<32x32xbf16>, vector<8x32xf32> -> vector<8x32xf32>
    %c0_14 = arith.constant 0 : index
    %c0_15 = arith.constant 0 : index
    %39 = vector.load %arg5[%c0_14, %c0_15] : memref<1x32xf32, #tpu.memory_space<vmem>>, vector<1x32xf32>
    %40 = vector.broadcast %39 : vector<1x32xf32> to vector<8x32xf32>
    %41 = arith.addf %38, %40 : vector<8x32xf32>
    %42 = arith.addf %1, %41 : vector<8x32xf32>
    %c0_16 = arith.constant 0 : index
    %c0_17 = arith.constant 0 : index
    %43 = vector.load %arg10[%c0_16, %c0_17] : memref<1x32xf32, #tpu.memory_space<vmem>>, vector<1x32xf32>
    %c0_18 = arith.constant 0 : index
    %c0_19 = arith.constant 0 : index
    %44 = vector.load %arg11[%c0_18, %c0_19] : memref<1x32xf32, #tpu.memory_space<vmem>>, vector<1x32xf32>
    %cst_20 = arith.constant dense<0.000000e+00> : vector<8xf32>
    %45 = vector.multi_reduction <add>, %42, %cst_20 [1] : vector<8x32xf32> to vector<8xf32>
    %46 = vector.shape_cast %45 : vector<8xf32> to vector<8x1xf32>
    %cst_21 = arith.constant 3.200000e+01 : f32
    %47 = vector.broadcast %cst_21 : f32 to vector<8x1xf32>
    %48 = arith.divf %46, %47 : vector<8x1xf32>
    %49 = vector.broadcast %48 : vector<8x1xf32> to vector<8x32xf32>
    %50 = arith.subf %42, %49 : vector<8x32xf32>
    %51 = arith.mulf %50, %50 : vector<8x32xf32>
    %cst_22 = arith.constant dense<0.000000e+00> : vector<8xf32>
    %52 = vector.multi_reduction <add>, %51, %cst_22 [1] : vector<8x32xf32> to vector<8xf32>
    %53 = vector.shape_cast %52 : vector<8xf32> to vector<8x1xf32>
    %cst_23 = arith.constant 3.200000e+01 : f32
    %54 = vector.broadcast %cst_23 : f32 to vector<8x1xf32>
    %55 = arith.divf %53, %54 : vector<8x1xf32>
    %56 = vector.broadcast %48 : vector<8x1xf32> to vector<8x32xf32>
    %57 = arith.subf %42, %56 : vector<8x32xf32>
    %cst_24 = arith.constant 9.99999974E-6 : f32
    %58 = vector.broadcast %cst_24 : f32 to vector<8x1xf32>
    %59 = arith.addf %55, %58 : vector<8x1xf32>
    %60 = math.rsqrt %59 : vector<8x1xf32>
    %61 = vector.broadcast %60 : vector<8x1xf32> to vector<8x32xf32>
    %62 = arith.mulf %57, %61 : vector<8x32xf32>
    %63 = vector.broadcast %43 : vector<1x32xf32> to vector<8x32xf32>
    %64 = arith.mulf %62, %63 : vector<8x32xf32>
    %65 = vector.broadcast %44 : vector<1x32xf32> to vector<8x32xf32>
    %66 = arith.addf %64, %65 : vector<8x32xf32>
    %67 = arith.truncf %66 : vector<8x32xf32> to vector<8x32xbf16>
    %c0_25 = arith.constant 0 : index
    %c0_26 = arith.constant 0 : index
    %68 = vector.load %arg6[%c0_25, %c0_26] : memref<32x64xbf16, #tpu.memory_space<vmem>>, vector<32x64xbf16>
    %cst_27 = arith.constant dense<0.000000e+00> : vector<8x64xf32>
    %69 = tpu.matmul %67, %68, %cst_27 {dimension_numbers = #tpu.dot_dimension_numbers<[1], [0], [0], [1], [0, 0, 1, 1], [], []>} : vector<8x32xbf16>, vector<32x64xbf16>, vector<8x64xf32> -> vector<8x64xf32>
    %c0_28 = arith.constant 0 : index
    %c0_29 = arith.constant 0 : index
    %70 = vector.load %arg7[%c0_28, %c0_29] : memref<1x64xf32, #tpu.memory_space<vmem>>, vector<1x64xf32>
    %71 = vector.broadcast %70 : vector<1x64xf32> to vector<8x64xf32>
    %72 = arith.addf %69, %71 : vector<8x64xf32>
    %cst_30 = arith.constant 0.000000e+00 : f32
    %73 = vector.broadcast %cst_30 : f32 to vector<8x64xf32>
    %74 = arith.maximumf %72, %73 : vector<8x64xf32>
    %75 = arith.truncf %74 : vector<8x64xf32> to vector<8x64xbf16>
    %c0_31 = arith.constant 0 : index
    %c0_32 = arith.constant 0 : index
    %76 = vector.load %arg8[%c0_31, %c0_32] : memref<64x32xbf16, #tpu.memory_space<vmem>>, vector<64x32xbf16>
    %cst_33 = arith.constant dense<0.000000e+00> : vector<8x32xf32>
    %77 = tpu.matmul %75, %76, %cst_33 {dimension_numbers = #tpu.dot_dimension_numbers<[1], [0], [0], [1], [0, 0, 1, 1], [], []>} : vector<8x64xbf16>, vector<64x32xbf16>, vector<8x32xf32> -> vector<8x32xf32>
    %c0_34 = arith.constant 0 : index
    %c0_35 = arith.constant 0 : index
    %78 = vector.load %arg9[%c0_34, %c0_35] : memref<1x32xf32, #tpu.memory_space<vmem>>, vector<1x32xf32>
    %79 = vector.broadcast %78 : vector<1x32xf32> to vector<8x32xf32>
    %80 = arith.addf %77, %79 : vector<8x32xf32>
    %81 = arith.addf %66, %80 : vector<8x32xf32>
    %c0_36 = arith.constant 0 : index
    %c0_37 = arith.constant 0 : index
    %82 = vector.load %arg12[%c0_36, %c0_37] : memref<1x32xf32, #tpu.memory_space<vmem>>, vector<1x32xf32>
    %c0_38 = arith.constant 0 : index
    %c0_39 = arith.constant 0 : index
    %83 = vector.load %arg13[%c0_38, %c0_39] : memref<1x32xf32, #tpu.memory_space<vmem>>, vector<1x32xf32>
    %cst_40 = arith.constant dense<0.000000e+00> : vector<8xf32>
    %84 = vector.multi_reduction <add>, %81, %cst_40 [1] : vector<8x32xf32> to vector<8xf32>
    %85 = vector.shape_cast %84 : vector<8xf32> to vector<8x1xf32>
    %cst_41 = arith.constant 3.200000e+01 : f32
    %86 = vector.broadcast %cst_41 : f32 to vector<8x1xf32>
    %87 = arith.divf %85, %86 : vector<8x1xf32>
    %88 = vector.broadcast %87 : vector<8x1xf32> to vector<8x32xf32>
    %89 = arith.subf %81, %88 : vector<8x32xf32>
    %90 = arith.mulf %89, %89 : vector<8x32xf32>
    %cst_42 = arith.constant dense<0.000000e+00> : vector<8xf32>
    %91 = vector.multi_reduction <add>, %90, %cst_42 [1] : vector<8x32xf32> to vector<8xf32>
    %92 = vector.shape_cast %91 : vector<8xf32> to vector<8x1xf32>
    %cst_43 = arith.constant 3.200000e+01 : f32
    %93 = vector.broadcast %cst_43 : f32 to vector<8x1xf32>
    %94 = arith.divf %92, %93 : vector<8x1xf32>
    %95 = vector.broadcast %87 : vector<8x1xf32> to vector<8x32xf32>
    %96 = arith.subf %81, %95 : vector<8x32xf32>
    %cst_44 = arith.constant 9.99999974E-6 : f32
    %97 = vector.broadcast %cst_44 : f32 to vector<8x1xf32>
    %98 = arith.addf %94, %97 : vector<8x1xf32>
    %99 = math.rsqrt %98 : vector<8x1xf32>
    %100 = vector.broadcast %99 : vector<8x1xf32> to vector<8x32xf32>
    %101 = arith.mulf %96, %100 : vector<8x32xf32>
    %102 = vector.broadcast %82 : vector<1x32xf32> to vector<8x32xf32>
    %103 = arith.mulf %101, %102 : vector<8x32xf32>
    %104 = vector.broadcast %83 : vector<1x32xf32> to vector<8x32xf32>
    %105 = arith.addf %103, %104 : vector<8x32xf32>
    %c0_45 = arith.constant 0 : index
    %c0_46 = arith.constant 0 : index
    %c0_47 = arith.constant 0 : index
    %106 = vector.load %arg14[%c0_45, %c0_46, %c0_47] : memref<1x8x32xf32, #tpu.memory_space<vmem>>, vector<1x8x32xf32>
    %107 = vector.shape_cast %106 : vector<1x8x32xf32> to vector<8x32xf32>
    %108 = vector.shape_cast %105 : vector<8x32xf32> to vector<1x8x32xf32>
    tpu.vector_store %arg14[%c0_45, %c0_46, %c0_47], %108 {strides = array<i32>} : memref<1x8x32xf32, #tpu.memory_space<vmem>>, vector<1x8x32xf32>,
    return
  }
  func.func @transform_0(%arg0: i32) -> (i32, i32, i32) {
    %c0_i32 = arith.constant 0 : i32
    %c0_i32_0 = arith.constant 0 : i32
    %c0_i32_1 = arith.constant 0 : i32
    return %arg0, %c0_i32, %c0_i32_0 : i32, i32, i32
  }
  func.func @transform_1(%arg0: i32) -> (i32, i32) {
    %c0_i32 = arith.constant 0 : i32
    %c0_i32_0 = arith.constant 0 : i32
    %c0_i32_1 = arith.constant 0 : i32
    return %c0_i32, %c0_i32_0 : i32, i32
  }
  func.func @transform_2(%arg0: i32) -> (i32, i32) {
    %c0_i32 = arith.constant 0 : i32
    %c0_i32_0 = arith.constant 0 : i32
    %c0_i32_1 = arith.constant 0 : i32
    return %c0_i32, %c0_i32_0 : i32, i32
  }
  func.func @transform_3(%arg0: i32) -> (i32, i32) {
    %c0_i32 = arith.constant 0 : i32
    %c0_i32_0 = arith.constant 0 : i32
    %c0_i32_1 = arith.constant 0 : i32
    return %c0_i32, %c0_i32_0 : i32, i32
  }
  func.func @transform_4(%arg0: i32) -> (i32, i32) {
    %c0_i32 = arith.constant 0 : i32
    %c0_i32_0 = arith.constant 0 : i32
    %c0_i32_1 = arith.constant 0 : i32
    return %c0_i32, %c0_i32_0 : i32, i32
  }
  func.func @transform_5(%arg0: i32) -> (i32, i32) {
    %c0_i32 = arith.constant 0 : i32
    %c0_i32_0 = arith.constant 0 : i32
    %c0_i32_1 = arith.constant 0 : i32
    return %c0_i32, %c0_i32_0 : i32, i32
  }
  func.func @transform_6(%arg0: i32) -> (i32, i32) {
    %c0_i32 = arith.constant 0 : i32
    %c0_i32_0 = arith.constant 0 : i32
    %c0_i32_1 = arith.constant 0 : i32
    return %c0_i32, %c0_i32_0 : i32, i32
  }
  func.func @transform_7(%arg0: i32) -> (i32, i32) {
    %c0_i32 = arith.constant 0 : i32
    %c0_i32_0 = arith.constant 0 : i32
    %c0_i32_1 = arith.constant 0 : i32
    return %c0_i32, %c0_i32_0 : i32, i32
  }
  func.func @transform_8(%arg0: i32) -> (i32, i32) {
    %c0_i32 = arith.constant 0 : i32
    %c0_i32_0 = arith.constant 0 : i32
    %c0_i32_1 = arith.constant 0 : i32
    return %c0_i32, %c0_i32_0 : i32, i32
  }
  func.func @transform_9(%arg0: i32) -> (i32, i32) {
    %c0_i32 = arith.constant 0 : i32
    %c0_i32_0 = arith.constant 0 : i32
    %c0_i32_1 = arith.constant 0 : i32
    return %c0_i32, %c0_i32_0 : i32, i32
  }
  func.func @transform_10(%arg0: i32) -> (i32, i32) {
    %c0_i32 = arith.constant 0 : i32
    %c0_i32_0 = arith.constant 0 : i32
    %c0_i32_1 = arith.constant 0 : i32
    return %c0_i32, %c0_i32_0 : i32, i32
  }
  func.func @transform_11(%arg0: i32) -> (i32, i32) {
    %c0_i32 = arith.constant 0 : i32
    %c0_i32_0 = arith.constant 0 : i32
    %c0_i32_1 = arith.constant 0 : i32
    return %c0_i32, %c0_i32_0 : i32, i32
  }
  func.func @transform_12(%arg0: i32) -> (i32, i32) {
    %c0_i32 = arith.constant 0 : i32
    %c0_i32_0 = arith.constant 0 : i32
    %c0_i32_1 = arith.constant 0 : i32
    return %c0_i32, %c0_i32_0 : i32, i32
  }
  func.func @transform_13(%arg0: i32) -> (i32, i32, i32) {
    %c0_i32 = arith.constant 0 : i32
    %c0_i32_0 = arith.constant 0 : i32
    %c0_i32_1 = arith.constant 0 : i32
    return %arg0, %c0_i32, %c0_i32_0 : i32, i32, i32
  }
}

module attributes {stable_mosaic.version = 11 : i64} {
  func.func @_matmul_bias_kernel(%arg0: i32, %arg1: i32, %arg2: i32, %arg3: memref<16x32xf32, #tpu.memory_space<vmem>>, %arg4: memref<32x128xbf16, #tpu.memory_space<vmem>>, %arg5: memref<1x128xf32, #tpu.memory_space<vmem>>, %arg6: memref<16x128xf32, #tpu.memory_space<vmem>>, %arg7: memref<16x128xf32, #tpu.memory_space<vmem>>) attributes {dimension_semantics = [#tpu.dimension_semantics<parallel>, #tpu.dimension_semantics<parallel>, #tpu.dimension_semantics<arbitrary>], iteration_bounds = array<i64: 1, 1, 1>, scalar_prefetch = 0 : i64, scratch_operands = 1 : i64, tpu.core_type = #tpu.core_type<tc>, window_params = [{transform_indices = @transform_0, window_bounds = array<i64: 16, 32>}, {transform_indices = @transform_1, window_bounds = array<i64: 32, 128>}, {transform_indices = @transform_2, window_bounds = array<i64: 1, 128>}, {transform_indices = @transform_3, window_bounds = array<i64: 16, 128>}]} {
    %c0_i32 = arith.constant 0 : i32
    %0 = arith.cmpi eq, %arg2, %c0_i32 : i32
    %1 = arith.extui %0 : i1 to i32
    %c0_i32_0 = arith.constant 0 : i32
    %2 = arith.cmpi ne, %1, %c0_i32_0 : i32
    scf.if %2 {
      %cst_10 = arith.constant 0.000000e+00 : f32
      %13 = vector.broadcast %cst_10 : f32 to vector<16x128xf32>
      %c0_11 = arith.constant 0 : index
      %c0_12 = arith.constant 0 : index
      %14 = vector.load %arg7[%c0_11, %c0_12] : memref<16x128xf32, #tpu.memory_space<vmem>>, vector<16x128xf32>
      tpu.vector_store %arg7[%c0_11, %c0_12], %13 {strides = array<i32>} : memref<16x128xf32, #tpu.memory_space<vmem>>, vector<16x128xf32>,
    } else {
    }
    %c0 = arith.constant 0 : index
    %c0_1 = arith.constant 0 : index
    %3 = vector.load %arg7[%c0, %c0_1] : memref<16x128xf32, #tpu.memory_space<vmem>>, vector<16x128xf32>
    %c0_2 = arith.constant 0 : index
    %c0_3 = arith.constant 0 : index
    %4 = vector.load %arg3[%c0_2, %c0_3] : memref<16x32xf32, #tpu.memory_space<vmem>>, vector<16x32xf32>
    %5 = arith.truncf %4 : vector<16x32xf32> to vector<16x32xbf16>
    %c0_4 = arith.constant 0 : index
    %c0_5 = arith.constant 0 : index
    %6 = vector.load %arg4[%c0_4, %c0_5] : memref<32x128xbf16, #tpu.memory_space<vmem>>, vector<32x128xbf16>
    %cst = arith.constant dense<0.000000e+00> : vector<16x128xf32>
    %7 = tpu.matmul %5, %6, %cst {dimension_numbers = #tpu.dot_dimension_numbers<[1], [0], [0], [1], [0, 0, 1, 1], [], []>} : vector<16x32xbf16>, vector<32x128xbf16>, vector<16x128xf32> -> vector<16x128xf32>
    %8 = arith.addf %3, %7 : vector<16x128xf32>
    %c0_6 = arith.constant 0 : index
    %c0_7 = arith.constant 0 : index
    %9 = vector.load %arg7[%c0_6, %c0_7] : memref<16x128xf32, #tpu.memory_space<vmem>>, vector<16x128xf32>
    tpu.vector_store %arg7[%c0_6, %c0_7], %8 {strides = array<i32>} : memref<16x128xf32, #tpu.memory_space<vmem>>, vector<16x128xf32>,
    %c0_i32_8 = arith.constant 0 : i32
    %10 = arith.cmpi eq, %arg2, %c0_i32_8 : i32
    %11 = arith.extui %10 : i1 to i32
    %c0_i32_9 = arith.constant 0 : i32
    %12 = arith.cmpi ne, %11, %c0_i32_9 : i32
    scf.if %12 {
      %c0_10 = arith.constant 0 : index
      %c0_11 = arith.constant 0 : index
      %13 = vector.load %arg7[%c0_10, %c0_11] : memref<16x128xf32, #tpu.memory_space<vmem>>, vector<16x128xf32>
      %c0_12 = arith.constant 0 : index
      %c0_13 = arith.constant 0 : index
      %14 = vector.load %arg5[%c0_12, %c0_13] : memref<1x128xf32, #tpu.memory_space<vmem>>, vector<1x128xf32>
      %15 = vector.broadcast %14 : vector<1x128xf32> to vector<16x128xf32>
      %16 = arith.addf %13, %15 : vector<16x128xf32>
      %c0_14 = arith.constant 0 : index
      %c0_15 = arith.constant 0 : index
      %17 = vector.load %arg6[%c0_14, %c0_15] : memref<16x128xf32, #tpu.memory_space<vmem>>, vector<16x128xf32>
      tpu.vector_store %arg6[%c0_14, %c0_15], %16 {strides = array<i32>} : memref<16x128xf32, #tpu.memory_space<vmem>>, vector<16x128xf32>,
    } else {
    }
    return
  }
  func.func @transform_0(%arg0: i32, %arg1: i32, %arg2: i32) -> (i32, i32) {
    %c0_i32 = arith.constant 0 : i32
    return %arg0, %arg2 : i32, i32
  }
  func.func @transform_1(%arg0: i32, %arg1: i32, %arg2: i32) -> (i32, i32) {
    %c0_i32 = arith.constant 0 : i32
    return %arg2, %arg1 : i32, i32
  }
  func.func @transform_2(%arg0: i32, %arg1: i32, %arg2: i32) -> (i32, i32) {
    %c0_i32 = arith.constant 0 : i32
    %c0_i32_0 = arith.constant 0 : i32
    return %c0_i32, %arg1 : i32, i32
  }
  func.func @transform_3(%arg0: i32, %arg1: i32, %arg2: i32) -> (i32, i32) {
    %c0_i32 = arith.constant 0 : i32
    return %arg0, %arg1 : i32, i32
  }
}

</mosaic_0001>

<llo_original>
// kernel: transformer_decoder_only_forward.5
$region0: #{transformer_decoder_only_forward.5}
  #allocation0 [shape = 'u32[]', space=smem, size = 0x4, offset = 0x4, fixed_abs, tag = 'smem constant byte address 0x4 - core index']
  #allocation1 [shape = 'u32[144,128]{1,0:T(1,128)}', space=vmem, size = 0x12000, scoped, tag = 'internal scratch']
  #allocation2 [shape = 'f32[16,128]{1,0:T(8,128)}', space=vmem, size = 0x2000, scoped, tag = 'scratch operand']
  %s0 = inlined_call_operand.vmem [shape: f32[16,32], index: 0, kind: input, shape index: {}]
  %s1 = inlined_call_operand.vmem [shape: bf16[32,128], index: 1, kind: input, shape index: {}]
  %s2 = inlined_call_operand.vmem [shape: f32[1,128], index: 2, kind: input, shape index: {}]
  %s3 = inlined_call_operand.vmem [shape: f32[16,128], index: 3, kind: output, shape index: {}]
  %s4 = sld [smem:[#allocation0]]
  $region30: #{transformer_decoder_only_forward.5} parent=0
    _
  %s6 = ssub.s32 1, %s4
  %s7 = scalar_select 0, %s6, %s4
  // Predicated region
  $region2: #{transformer_decoder_only_forward.5} parent=0 // pred_check
    _
  $region3: #{transformer_decoder_only_forward.5} parent=0 // pred_check_branch
    %9 = sbr.rel (0) target = $region5
  $region4: #{transformer_decoder_only_forward.5} parent=0 // pred_region
    _
  $region5: #{transformer_decoder_only_forward.5} parent=0 // pred_fallthru
    _
  // Predicated region
  $region6: #{transformer_decoder_only_forward.5} parent=0 // pred_check
    _
  $region7: #{transformer_decoder_only_forward.5} parent=0 // pred_check_branch
    %11 = sbr.rel (0) target = $region9
  $region8: #{transformer_decoder_only_forward.5} parent=0 // pred_region
    _
  $region9: #{transformer_decoder_only_forward.5} parent=0 // pred_fallthru
    _
  // Predicated region
  $region10: #{transformer_decoder_only_forward.5} parent=0 // pred_check
    _
  $region11: #{transformer_decoder_only_forward.5} parent=0 // pred_check_branch
    %13 = sbr.rel (0) target = $region13
  $region12: #{transformer_decoder_only_forward.5} parent=0 // pred_region
    _
  $region13: #{transformer_decoder_only_forward.5} parent=0 // pred_fallthru
    _
  %p15 = scmp.eq.s32.totalorder 0, 0
  // Predicated region
  $region14: #{transformer_decoder_only_forward.5} parent=0 // pred_check
    %p16 = pneg %p15
  $region15: #{transformer_decoder_only_forward.5} parent=0 // pred_check_branch
    %18 = sbr.rel (%p16) target = $region17
  $region16: #{transformer_decoder_only_forward.5} parent=0 // pred_region
    %19 = vst [vmem:[#allocation2] sm:$0xff] 0.0
    %20 = vst [vmem:[#allocation2 + $0x8] sm:$0xff] 0.0
  $region17: #{transformer_decoder_only_forward.5} parent=0 // pred_fallthru
    _
  %v21 = vld [vmem:[#allocation2] sm:$0xff]
  %v22 = vld [vmem:[#allocation2 + $0x8] sm:$0xff]
  %v23 = vld [vmem:[%s0] sm:$0xff]
  %v24 = vld [vmem:[%s0 + $0x8] sm:$0xff]
  %v25 = vpack.c.bf16 %v24, %v23
  %v26 = vld [vmem:[%s1] sm:$0xf]
  %v27 = vld [vmem:[%s1 + $0x4] sm:$0xf]
  %v28 = vld [vmem:[%s1 + $0x8] sm:$0xf]
  %v29 = vld [vmem:[%s1 + $0xc] sm:$0xf]
  %v34 = vunpack.c.l.b16 %v26
  %v35 = vunpack.c.l.b16 %v27
  %v36 = vunpack.c.l.b16 %v28
  %v37 = vunpack.c.l.b16 %v29
  %v38 = vpack.c.b16 %v35, %v34
  %v39 = vpack.c.b16 %v37, %v36
  %vm42 = vcmask 261120
  %v44 = vsel %vm42, %v25, 0
  %46 = vmatprep.subr.bf16.mxu0 0
  %47 = vmatpush1.bf16.msra.mxu0 0
  %48 = vmatprep.subr.bf16.mxu0 0
  %49 = vmatpush1.bf16.msra.mxu0 0
  %50 = vmatprep.subr.bf16.mxu0 0
  %51 = vmatpush1.bf16.msra.mxu0 0
  %52 = vmatprep.subr.bf16.mxu0 0
  %53 = vmatpush1.bf16.msra.mxu0 0
  %54 = vmatprep.subr.bf16.mxu0 0
  %55 = vmatpush1.bf16.msra.mxu0 0
  %56 = vmatprep.subr.bf16.mxu0 0
  %57 = vmatpush1.bf16.msra.mxu0 0
  %58 = vmatprep.subr.bf16.mxu0 0
  %59 = vmatpush1.bf16.msra.mxu0 %v39
  %60 = vmatprep.subr.bf16.mxu0 0
  %61 = vmatpush1.bf16.msra.mxu0 %v38
  %62 = vmatprep.subr.bf16.mxu0 0
  %63 = vmatpush2.bf16.msra.mxu0 0
  %64 = vmatprep.subr.bf16.mxu0 0
  %65 = vmatpush2.bf16.msra.mxu0 0
  %66 = vmatprep.subr.bf16.mxu0 0
  %67 = vmatpush2.bf16.msra.mxu0 0
  %68 = vmatprep.subr.bf16.mxu0 0
  %69 = vmatpush2.bf16.msra.mxu0 0
  %70 = vmatprep.subr.bf16.mxu0 0
  %71 = vmatpush2.bf16.msra.mxu0 0
  %72 = vmatprep.subr.bf16.mxu0 0
  %73 = vmatpush2.bf16.msra.mxu0 0
  %74 = vmatprep.subr.bf16.mxu0 0
  %75 = vmatpush2.bf16.msra.mxu0 0
  %76 = vmatprep.subr.bf16.mxu0 0
  %77 = vmatpush2.bf16.msra.mxu0 0
  %78 = vmatprep.mubr.bf16.mxu0 0
  %79 = vmatmul.mubr.bf16.gmra.mxu0 %v44
  %v80 = vpop.f32.mrf.mxu0
  %v81 = vadd.f32 0.0, %v80
  %v82 = vpop.f32.mrf.mxu0
  %v83 = vpop.f32.mrf.mxu0
  %v84 = vadd.f32 0.0, %v83
  %v85 = vpop.f32.mrf.mxu0
  %86 = vdwg.mxu0
  %v87 = vadd.f32 %v21, %v81
  %v88 = vadd.f32 %v22, %v84
  %89 = vst [vmem:[#allocation2] sm:$0xff] %v87
  %90 = vst [vmem:[#allocation2 + $0x8] sm:$0xff] %v88
  // Predicated region
  $region18: #{transformer_decoder_only_forward.5} parent=0 // pred_check
    %p91 = pneg %p15
  $region19: #{transformer_decoder_only_forward.5} parent=0 // pred_check_branch
    %93 = sbr.rel (%p91) target = $region21
  $region20: #{transformer_decoder_only_forward.5} parent=0 // pred_region
    %v94 = vld [vmem:[#allocation2] sm:$0xff]
    %v95 = vld [vmem:[#allocation2 + $0x8] sm:$0xff]
    %v96 = vld [vmem:[%s2] sm:$0x1]
    %v98 = vlaneseq
    %v99 = vshrl.u32 %v98, 7
    %v100 = vsub.s32 0, %v99
    %v101 = vrot.slane %v96, %v100
    %v103 = vadd.f32 %v94, %v101
    %v104 = vadd.f32 %v95, %v101
    %105 = vst [vmem:[%s3] sm:$0xff] %v103
    %106 = vst [vmem:[%s3 + $0x8] sm:$0xff] %v104
  $region21: #{transformer_decoder_only_forward.5} parent=0 // pred_fallthru
    _
  // Predicated region
  $region22: #{transformer_decoder_only_forward.5} parent=0 // pred_check
    _
  $region23: #{transformer_decoder_only_forward.5} parent=0 // pred_check_branch
    %108 = sbr.rel (0) target = $region25
  $region24: #{transformer_decoder_only_forward.5} parent=0 // pred_region
    _
  $region25: #{transformer_decoder_only_forward.5} parent=0 // pred_fallthru
    _
  // Predicated region
  $region26: #{transformer_decoder_only_forward.5} parent=0 // pred_check
    _
  $region27: #{transformer_decoder_only_forward.5} parent=0 // pred_check_branch
    %110 = sbr.rel (0) target = $region29
  $region28: #{transformer_decoder_only_forward.5} parent=0 // pred_region
    _
  $region29: #{transformer_decoder_only_forward.5} parent=0 // pred_fallthru
    _

// kernel: transformer_decoder_only_forward.3
$region0: #{transformer_decoder_only_forward.3}
  #allocation0 [shape = 'u32[]', space=smem, size = 0x4, offset = 0x4, fixed_abs, tag = 'smem constant byte address 0x4 - core index']
  #allocation1 [shape = 'u32[144,128]{1,0:T(1,128)}', space=vmem, size = 0x12000, scoped, tag = 'internal scratch']
  %s0 = inlined_call_operand.vmem [shape: f32[2,8,32], index: 0, kind: input, shape index: {}]
  %s1 = inlined_call_operand.vmem [shape: bf16[32,96], index: 1, kind: input, shape index: {}]
  %s2 = inlined_call_operand.vmem [shape: f32[1,96], index: 2, kind: input, shape index: {}]
  %s3 = inlined_call_operand.vmem [shape: bf16[32,32], index: 3, kind: input, shape index: {}]
  %s4 = inlined_call_operand.vmem [shape: f32[1,32], index: 4, kind: input, shape index: {}]
  %s5 = inlined_call_operand.vmem [shape: bf16[32,64], index: 5, kind: input, shape index: {}]
  %s6 = inlined_call_operand.vmem [shape: f32[1,64], index: 6, kind: input, shape index: {}]
  %s7 = inlined_call_operand.vmem [shape: bf16[64,32], index: 7, kind: input, shape index: {}]
  %s8 = inlined_call_operand.vmem [shape: f32[1,32], index: 8, kind: input, shape index: {}]
  %s9 = inlined_call_operand.vmem [shape: f32[1,32], index: 9, kind: input, shape index: {}]
  %s10 = inlined_call_operand.vmem [shape: f32[1,32], index: 10, kind: input, shape index: {}]
  %s11 = inlined_call_operand.vmem [shape: f32[1,32], index: 11, kind: input, shape index: {}]
  %s12 = inlined_call_operand.vmem [shape: f32[1,32], index: 12, kind: input, shape index: {}]
  %s13 = inlined_call_operand.vmem [shape: f32[2,8,32], index: 13, kind: output, shape index: {}]
  %s14 = sld [smem:[#allocation0]]
  $region85: #{transformer_decoder_only_forward.3} parent=0
    _
  %s16 = ssub.s32 1, %s14
  %s17 = scalar_select 0, %s16, %s14
  loop: start=0, step=1, limit=4
  $region2: #{transformer_decoder_only_forward.3} parent=0 // loop_pre_header
    _
  $region3: #{transformer_decoder_only_forward.3} parent=0 // loop_header
    %s19 = sphi 0, %s23
    %p20 = scmp.ge.s32.totalorder %s19, 4
    %s29 = sphi 0, %s31
    %s32 = sphi 0, %s29
    %s33 = sphi 0, %s32
    %s49 = sphi 0, %s33
    %s53 = sphi 0, %s53
    %s55 = sphi 0, %s53
    %s56 = sphi 0, %s55
    %s70 = sphi 0, %s56
    %s74 = sphi 0, %s74
    %s76 = sphi 0, %s74
    %s77 = sphi 0, %s76
    %s91 = sphi 0, %s77
    %s95 = sphi 0, %s95
    %s97 = sphi 0, %s95
    %s98 = sphi 0, %s97
    %s112 = sphi 0, %s98
    %s116 = sphi 0, %s116
    %s118 = sphi 0, %s116
    %s119 = sphi 0, %s118
    %s133 = sphi 0, %s119
    %s137 = sphi 0, %s137
    %s139 = sphi 0, %s137
    %s140 = sphi 0, %s139
    %s154 = sphi 0, %s140
    %s158 = sphi 0, %s158
    %s160 = sphi 0, %s158
    %s161 = sphi 0, %s160
    %s175 = sphi 0, %s161
    %s179 = sphi 0, %s179
    %s181 = sphi 0, %s179
    %s182 = sphi 0, %s181
    %s196 = sphi 0, %s182
    %s200 = sphi 0, %s200
    %s202 = sphi 0, %s200
    %s203 = sphi 0, %s202
    %s217 = sphi 0, %s203
    %s221 = sphi 0, %s221
    %s223 = sphi 0, %s221
    %s224 = sphi 0, %s223
    %s238 = sphi 0, %s224
    %s242 = sphi 0, %s242
    %s244 = sphi 0, %s242
    %s245 = sphi 0, %s244
    %s259 = sphi 0, %s245
    %s263 = sphi 0, %s263
    %s265 = sphi 0, %s263
    %s266 = sphi 0, %s265
    %s280 = sphi 0, %s266
    %s284 = sphi 0, %s284
    %s286 = sphi 0, %s284
    %s287 = sphi 0, %s286
    %s301 = sphi 0, %s287
    %s307 = sphi 0, %s309
    %s310 = sphi 0, %s307
    %s311 = sphi 0, %s310
    %s327 = sphi 0, %s311
  $region4: #{transformer_decoder_only_forward.3} parent=0 // loop_header_branch
    %22 = sbr.rel (%p20) target = $region8
  $region5: #{transformer_decoder_only_forward.3} parent=0 // loop_body
    %s24 = ssub.s32 %s19, 1
    %s25 = ssub.s32 %s19, 2
    %s26 = sadd.s32 %s19, 1
    %s27 = ssub.s32 %s19, %s26
    %p28 = scmp.eq.s32.totalorder %s27, 0
    %s30 = sadd.s32 %s29, 1
    %s31 = scalar_select %p28, %s29, %s30
    %p34 = pneg %p28
    %p35 = scmp.eq.s32.totalorder %s19, 1
    %p36 = por %p34, %p35
    %p37 = scmp.ne.s32.totalorder %s29, %s32
    %p38 = scmp.eq.s32.totalorder %s19, 0
    %p39 = por %p37, %p38
    %p40 = scmp.ne.s32.totalorder %s29, %s32
    %p41 = scmp.eq.s32.totalorder %s24, 1
    %p42 = por %p40, %p41
    %p43 = scmp.ne.s32.totalorder %s32, %s33
    %p44 = scmp.eq.s32.totalorder %s24, 0
    %p45 = por %p43, %p44
    %p46 = scmp.ne.s32.totalorder %s32, %s33
    %p47 = scmp.eq.s32.totalorder %s25, 1
    %p48 = por %p46, %p47
    %p50 = scmp.ne.s32.totalorder %s33, %s49
    %p51 = scmp.eq.s32.totalorder %s25, 0
    %p52 = por %p50, %p51
    %s54 = sadd.s32 %s53, 1
    %p57 = scmp.eq.s32.totalorder %s19, 1
    %p58 = scmp.ne.s32.totalorder %s53, %s55
    %p59 = scmp.eq.s32.totalorder %s19, 0
    %p60 = por %p58, %p59
    %p61 = scmp.ne.s32.totalorder %s53, %s55
    %p62 = scmp.eq.s32.totalorder %s24, 1
    %p63 = por %p61, %p62
    %p64 = scmp.ne.s32.totalorder %s55, %s56
    %p65 = scmp.eq.s32.totalorder %s24, 0
    %p66 = por %p64, %p65
    %p67 = scmp.ne.s32.totalorder %s55, %s56
    %p68 = scmp.eq.s32.totalorder %s25, 1
    %p69 = por %p67, %p68
    %p71 = scmp.ne.s32.totalorder %s56, %s70
    %p72 = scmp.eq.s32.totalorder %s25, 0
    %p73 = por %p71, %p72
    %s75 = sadd.s32 %s74, 1
    %p78 = scmp.eq.s32.totalorder %s19, 1
    %p79 = scmp.ne.s32.totalorder %s74, %s76
    %p80 = scmp.eq.s32.totalorder %s19, 0
    %p81 = por %p79, %p80
    %p82 = scmp.ne.s32.totalorder %s74, %s76
    %p83 = scmp.eq.s32.totalorder %s24, 1
    %p84 = por %p82, %p83
    %p85 = scmp.ne.s32.totalorder %s76, %s77
    %p86 = scmp.eq.s32.totalorder %s24, 0
    %p87 = por %p85, %p86
    %p88 = scmp.ne.s32.totalorder %s76, %s77
    %p89 = scmp.eq.s32.totalorder %s25, 1
    %p90 = por %p88, %p89
    %p92 = scmp.ne.s32.totalorder %s77, %s91
    %p93 = scmp.eq.s32.totalorder %s25, 0
    %p94 = por %p92, %p93
    %s96 = sadd.s32 %s95, 1
    %p99 = scmp.eq.s32.totalorder %s19, 1
    %p100 = scmp.ne.s32.totalorder %s95, %s97
    %p101 = scmp.eq.s32.totalorder %s19, 0
    %p102 = por %p100, %p101
    %p103 = scmp.ne.s32.totalorder %s95, %s97
    %p104 = scmp.eq.s32.totalorder %s24, 1
    %p105 = por %p103, %p104
    %p106 = scmp.ne.s32.totalorder %s97, %s98
    %p107 = scmp.eq.s32.totalorder %s24, 0
    %p108 = por %p106, %p107
    %p109 = scmp.ne.s32.totalorder %s97, %s98
    %p110 = scmp.eq.s32.totalorder %s25, 1
    %p111 = por %p109, %p110
    %p113 = scmp.ne.s32.totalorder %s98, %s112
    %p114 = scmp.eq.s32.totalorder %s25, 0
    %p115 = por %p113, %p114
    %s117 = sadd.s32 %s116, 1
    %p120 = scmp.eq.s32.totalorder %s19, 1
    %p121 = scmp.ne.s32.totalorder %s116, %s118
    %p122 = scmp.eq.s32.totalorder %s19, 0
    %p123 = por %p121, %p122
    %p124 = scmp.ne.s32.totalorder %s116, %s118
    %p125 = scmp.eq.s32.totalorder %s24, 1
    %p126 = por %p124, %p125
    %p127 = scmp.ne.s32.totalorder %s118, %s119
    %p128 = scmp.eq.s32.totalorder %s24, 0
    %p129 = por %p127, %p128
    %p130 = scmp.ne.s32.totalorder %s118, %s119
    %p131 = scmp.eq.s32.totalorder %s25, 1
    %p132 = por %p130, %p131
    %p134 = scmp.ne.s32.totalorder %s119, %s133
    %p135 = scmp.eq.s32.totalorder %s25, 0
    %p136 = por %p134, %p135
    %s138 = sadd.s32 %s137, 1
    %p141 = scmp.eq.s32.totalorder %s19, 1
    %p142 = scmp.ne.s32.totalorder %s137, %s139
    %p143 = scmp.eq.s32.totalorder %s19, 0
    %p144 = por %p142, %p143
    %p145 = scmp.ne.s32.totalorder %s137, %s139
    %p146 = scmp.eq.s32.totalorder %s24, 1
    %p147 = por %p145, %p146
    %p148 = scmp.ne.s32.totalorder %s139, %s140
    %p149 = scmp.eq.s32.totalorder %s24, 0
    %p150 = por %p148, %p149
    %p151 = scmp.ne.s32.totalorder %s139, %s140
    %p152 = scmp.eq.s32.totalorder %s25, 1
    %p153 = por %p151, %p152
    %p155 = scmp.ne.s32.totalorder %s140, %s154
    %p156 = scmp.eq.s32.totalorder %s25, 0
    %p157 = por %p155, %p156
    %s159 = sadd.s32 %s158, 1
    %p162 = scmp.eq.s32.totalorder %s19, 1
    %p163 = scmp.ne.s32.totalorder %s158, %s160
    %p164 = scmp.eq.s32.totalorder %s19, 0
    %p165 = por %p163, %p164
    %p166 = scmp.ne.s32.totalorder %s158, %s160
    %p167 = scmp.eq.s32.totalorder %s24, 1
    %p168 = por %p166, %p167
    %p169 = scmp.ne.s32.totalorder %s160, %s161
    %p170 = scmp.eq.s32.totalorder %s24, 0
    %p171 = por %p169, %p170
    %p172 = scmp.ne.s32.totalorder %s160, %s161
    %p173 = scmp.eq.s32.totalorder %s25, 1
    %p174 = por %p172, %p173
    %p176 = scmp.ne.s32.totalorder %s161, %s175
    %p177 = scmp.eq.s32.totalorder %s25, 0
    %p178 = por %p176, %p177
    %s180 = sadd.s32 %s179, 1
    %p183 = scmp.eq.s32.totalorder %s19, 1
    %p184 = scmp.ne.s32.totalorder %s179, %s181
    %p185 = scmp.eq.s32.totalorder %s19, 0
    %p186 = por %p184, %p185
    %p187 = scmp.ne.s32.totalorder %s179, %s181
    %p188 = scmp.eq.s32.totalorder %s24, 1
    %p189 = por %p187, %p188
    %p190 = scmp.ne.s32.totalorder %s181, %s182
    %p191 = scmp.eq.s32.totalorder %s24, 0
    %p192 = por %p190, %p191
    %p193 = scmp.ne.s32.totalorder %s181, %s182
    %p194 = scmp.eq.s32.totalorder %s25, 1
    %p195 = por %p193, %p194
    %p197 = scmp.ne.s32.totalorder %s182, %s196
    %p198 = scmp.eq.s32.totalorder %s25, 0
    %p199 = por %p197, %p198
    %s201 = sadd.s32 %s200, 1
    %p204 = scmp.eq.s32.totalorder %s19, 1
    %p205 = scmp.ne.s32.totalorder %s200, %s202
    %p206 = scmp.eq.s32.totalorder %s19, 0
    %p207 = por %p205, %p206
    %p208 = scmp.ne.s32.totalorder %s200, %s202
    %p209 = scmp.eq.s32.totalorder %s24, 1
    %p210 = por %p208, %p209
    %p211 = scmp.ne.s32.totalorder %s202, %s203
    %p212 = scmp.eq.s32.totalorder %s24, 0
    %p213 = por %p211, %p212
    %p214 = scmp.ne.s32.totalorder %s202, %s203
    %p215 = scmp.eq.s32.totalorder %s25, 1
    %p216 = por %p214, %p215
    %p218 = scmp.ne.s32.totalorder %s203, %s217
    %p219 = scmp.eq.s32.totalorder %s25, 0
    %p220 = por %p218, %p219
    %s222 = sadd.s32 %s221, 1
    %p225 = scmp.eq.s32.totalorder %s19, 1
    %p226 = scmp.ne.s32.totalorder %s221, %s223
    %p227 = scmp.eq.s32.totalorder %s19, 0
    %p228 = por %p226, %p227
    %p229 = scmp.ne.s32.totalorder %s221, %s223
    %p230 = scmp.eq.s32.totalorder %s24, 1
    %p231 = por %p229, %p230
    %p232 = scmp.ne.s32.totalorder %s223, %s224
    %p233 = scmp.eq.s32.totalorder %s24, 0
    %p234 = por %p232, %p233
    %p235 = scmp.ne.s32.totalorder %s223, %s224
    %p236 = scmp.eq.s32.totalorder %s25, 1
    %p237 = por %p235, %p236
    %p239 = scmp.ne.s32.totalorder %s224, %s238
    %p240 = scmp.eq.s32.totalorder %s25, 0
    %p241 = por %p239, %p240
    %s243 = sadd.s32 %s242, 1
    %p246 = scmp.eq.s32.totalorder %s19, 1
    %p247 = scmp.ne.s32.totalorder %s242, %s244
    %p248 = scmp.eq.s32.totalorder %s19, 0
    %p249 = por %p247, %p248
    %p250 = scmp.ne.s32.totalorder %s242, %s244
    %p251 = scmp.eq.s32.totalorder %s24, 1
    %p252 = por %p250, %p251
    %p253 = scmp.ne.s32.totalorder %s244, %s245
    %p254 = scmp.eq.s32.totalorder %s24, 0
    %p255 = por %p253, %p254
    %p256 = scmp.ne.s32.totalorder %s244, %s245
    %p257 = scmp.eq.s32.totalorder %s25, 1
    %p258 = por %p256, %p257
    %p260 = scmp.ne.s32.totalorder %s245, %s259
    %p261 = scmp.eq.s32.totalorder %s25, 0
    %p262 = por %p260, %p261
    %s264 = sadd.s32 %s263, 1
    %p267 = scmp.eq.s32.totalorder %s19, 1
    %p268 = scmp.ne.s32.totalorder %s263, %s265
    %p269 = scmp.eq.s32.totalorder %s19, 0
    %p270 = por %p268, %p269
    %p271 = scmp.ne.s32.totalorder %s263, %s265
    %p272 = scmp.eq.s32.totalorder %s24, 1
    %p273 = por %p271, %p272
    %p274 = scmp.ne.s32.totalorder %s265, %s266
    %p275 = scmp.eq.s32.totalorder %s24, 0
    %p276 = por %p274, %p275
    %p277 = scmp.ne.s32.totalorder %s265, %s266
    %p278 = scmp.eq.s32.totalorder %s25, 1
    %p279 = por %p277, %p278
    %p281 = scmp.ne.s32.totalorder %s266, %s280
    %p282 = scmp.eq.s32.totalorder %s25, 0
    %p283 = por %p281, %p282
    %s285 = sadd.s32 %s284, 1
    %p288 = scmp.eq.s32.totalorder %s19, 1
    %p289 = scmp.ne.s32.totalorder %s284, %s286
    %p290 = scmp.eq.s32.totalorder %s19, 0
    %p291 = por %p289, %p290
    %p292 = scmp.ne.s32.totalorder %s284, %s286
    %p293 = scmp.eq.s32.totalorder %s24, 1
    %p294 = por %p292, %p293
    %p295 = scmp.ne.s32.totalorder %s286, %s287
    %p296 = scmp.eq.s32.totalorder %s24, 0
    %p297 = por %p295, %p296
    %p298 = scmp.ne.s32.totalorder %s286, %s287
    %p299 = scmp.eq.s32.totalorder %s25, 1
    %p300 = por %p298, %p299
    %p302 = scmp.ne.s32.totalorder %s287, %s301
    %p303 = scmp.eq.s32.totalorder %s25, 0
    %p304 = por %p302, %p303
    %s305 = ssub.s32 %s19, %s26
    %p306 = scmp.eq.s32.totalorder %s305, 0
    %s308 = sadd.s32 %s307, 1
    %s309 = scalar_select %p306, %s307, %s308
    %p312 = pneg %p306
    %p313 = scmp.eq.s32.totalorder %s19, 1
    %p314 = por %p312, %p313
    %p315 = scmp.ne.s32.totalorder %s307, %s310
    %p316 = scmp.eq.s32.totalorder %s19, 0
    %p317 = por %p315, %p316
    %p318 = scmp.ne.s32.totalorder %s307, %s310
    %p319 = scmp.eq.s32.totalorder %s24, 1
    %p320 = por %p318, %p319
    %p321 = scmp.ne.s32.totalorder %s310, %s311
    %p322 = scmp.eq.s32.totalorder %s24, 0
    %p323 = por %p321, %p322
    %p324 = scmp.ne.s32.totalorder %s310, %s311
    %p325 = scmp.eq.s32.totalorder %s25, 1
    %p326 = por %p324, %p325
    %p328 = scmp.ne.s32.totalorder %s311, %s327
    %p329 = scmp.eq.s32.totalorder %s25, 0
    %p330 = por %p328, %p329
    %p331 = scmp.le.s32.totalorder 1, %s19
    %p332 = scmp.lt.s32.totalorder %s19, 3
    %p333 = pnand %p331, %p332
    %p334 = pneg %p333
    // Predicated region
    $region9: #{transformer_decoder_only_forward.3} parent=5 // pred_check
      _
    $region10: #{transformer_decoder_only_forward.3} parent=5 // pred_check_branch
      %336 = sbr.rel (%p333) target = $region12
    $region11: #{transformer_decoder_only_forward.3} parent=5 // pred_region
      %s337 = ssub.s32 %s19, 1
      // Predicated region
      $region13: #{transformer_decoder_only_forward.3} parent=11 // pred_check
        %p338 = pneg %p66
      $region14: #{transformer_decoder_only_forward.3} parent=11 // pred_check_branch
        %340 = sbr.rel (%p338) target = $region16
      $region15: #{transformer_decoder_only_forward.3} parent=11 // pred_region
        _
      $region16: #{transformer_decoder_only_forward.3} parent=11 // pred_fallthru
        _
      // Predicated region
      $region17: #{transformer_decoder_only_forward.3} parent=11 // pred_check
        %p341 = pneg %p87
      $region18: #{transformer_decoder_only_forward.3} parent=11 // pred_check_branch
        %343 = sbr.rel (%p341) target = $region20
      $region19: #{transformer_decoder_only_forward.3} parent=11 // pred_region
        _
      $region20: #{transformer_decoder_only_forward.3} parent=11 // pred_fallthru
        _
      // Predicated region
      $region21: #{transformer_decoder_only_forward.3} parent=11 // pred_check
        %p344 = pneg %p108
      $region22: #{transformer_decoder_only_forward.3} parent=11 // pred_check_branch
        %346 = sbr.rel (%p344) target = $region24
      $region23: #{transformer_decoder_only_forward.3} parent=11 // pred_region
        _
      $region24: #{transformer_decoder_only_forward.3} parent=11 // pred_fallthru
        _
      // Predicated region
      $region25: #{transformer_decoder_only_forward.3} parent=11 // pred_check
        %p347 = pneg %p129
      $region26: #{transformer_decoder_only_forward.3} parent=11 // pred_check_branch
        %349 = sbr.rel (%p347) target = $region28
      $region27: #{transformer_decoder_only_forward.3} parent=11 // pred_region
        _
      $region28: #{transformer_decoder_only_forward.3} parent=11 // pred_fallthru
        _
      // Predicated region
      $region29: #{transformer_decoder_only_forward.3} parent=11 // pred_check
        %p350 = pneg %p150
      $region30: #{transformer_decoder_only_forward.3} parent=11 // pred_check_branch
        %352 = sbr.rel (%p350) target = $region32
      $region31: #{transformer_decoder_only_forward.3} parent=11 // pred_region
        _
      $region32: #{transformer_decoder_only_forward.3} parent=11 // pred_fallthru
        _
      // Predicated region
      $region33: #{transformer_decoder_only_forward.3} parent=11 // pred_check
        %p353 = pneg %p171
      $region34: #{transformer_decoder_only_forward.3} parent=11 // pred_check_branch
        %355 = sbr.rel (%p353) target = $region36
      $region35: #{transformer_decoder_only_forward.3} parent=11 // pred_region
        _
      $region36: #{transformer_decoder_only_forward.3} parent=11 // pred_fallthru
        _
      // Predicated region
      $region37: #{transformer_decoder_only_forward.3} parent=11 // pred_check
        %p356 = pneg %p192
      $region38: #{transformer_decoder_only_forward.3} parent=11 // pred_check_branch
        %358 = sbr.rel (%p356) target = $region40
      $region39: #{transformer_decoder_only_forward.3} parent=11 // pred_region
        _
      $region40: #{transformer_decoder_only_forward.3} parent=11 // pred_fallthru
        _
      // Predicated region
      $region41: #{transformer_decoder_only_forward.3} parent=11 // pred_check
        %p359 = pneg %p213
      $region42: #{transformer_decoder_only_forward.3} parent=11 // pred_check_branch
        %361 = sbr.rel (%p359) target = $region44
      $region43: #{transformer_decoder_only_forward.3} parent=11 // pred_region
        _
      $region44: #{transformer_decoder_only_forward.3} parent=11 // pred_fallthru
        _
      // Predicated region
      $region45: #{transformer_decoder_only_forward.3} parent=11 // pred_check
        %p362 = pneg %p234
      $region46: #{transformer_decoder_only_forward.3} parent=11 // pred_check_branch
        %364 = sbr.rel (%p362) target = $region48
      $region47: #{transformer_decoder_only_forward.3} parent=11 // pred_region
        _
      $region48: #{transformer_decoder_only_forward.3} parent=11 // pred_fallthru
        _
      // Predicated region
      $region49: #{transformer_decoder_only_forward.3} parent=11 // pred_check
        %p365 = pneg %p255
      $region50: #{transformer_decoder_only_forward.3} parent=11 // pred_check_branch
        %367 = sbr.rel (%p365) target = $region52
      $region51: #{transformer_decoder_only_forward.3} parent=11 // pred_region
        _
      $region52: #{transformer_decoder_only_forward.3} parent=11 // pred_fallthru
        _
      // Predicated region
      $region53: #{transformer_decoder_only_forward.3} parent=11 // pred_check
        %p368 = pneg %p276
      $region54: #{transformer_decoder_only_forward.3} parent=11 // pred_check_branch
        %370 = sbr.rel (%p368) target = $region56
      $region55: #{transformer_decoder_only_forward.3} parent=11 // pred_region
        _
      $region56: #{transformer_decoder_only_forward.3} parent=11 // pred_fallthru
        _
      // Predicated region
      $region57: #{transformer_decoder_only_forward.3} parent=11 // pred_check
        %p371 = pneg %p297
      $region58: #{transformer_decoder_only_forward.3} parent=11 // pred_check_branch
        %373 = sbr.rel (%p371) target = $region60
      $region59: #{transformer_decoder_only_forward.3} parent=11 // pred_region
        _
      $region60: #{transformer_decoder_only_forward.3} parent=11 // pred_fallthru
        _
    $region12: #{transformer_decoder_only_forward.3} parent=5 // pred_fallthru
      _
    %p374 = scmp.lt.s32.totalorder %s19, 2
    // Predicated region
    $region61: #{transformer_decoder_only_forward.3} parent=5 // pred_check
      %p375 = pneg %p374
    $region62: #{transformer_decoder_only_forward.3} parent=5 // pred_check_branch
      %377 = sbr.rel (%p375) target = $region64
    $region63: #{transformer_decoder_only_forward.3} parent=5 // pred_region
      // Predicated region
      $region65: #{transformer_decoder_only_forward.3} parent=63 // pred_check
        %p378 = pneg %p39
      $region66: #{transformer_decoder_only_forward.3} parent=63 // pred_check_branch
        %380 = sbr.rel (%p378) target = $region68
      $region67: #{transformer_decoder_only_forward.3} parent=63 // pred_region
        %p381 = scmp.lt.s32.totalorder %s19, 1
        %s382 = scalar_select %p381, %s19, 1
        %s383 = smul.addr %s382, 8
        %s384 = scalar_lea.vmem %s0, %s383
      $region68: #{transformer_decoder_only_forward.3} parent=63 // pred_fallthru
        _
    $region64: #{transformer_decoder_only_forward.3} parent=5 // pred_fallthru
      _
    %p385 = scmp.le.s32.totalorder 1, %s19
    %p386 = scmp.lt.s32.totalorder %s19, 3
    %p387 = pnand %p385, %p386
    %p388 = pneg %p387
    // Predicated region
    $region69: #{transformer_decoder_only_forward.3} parent=5 // pred_check
      _
    $region70: #{transformer_decoder_only_forward.3} parent=5 // pred_check_branch
      %390 = sbr.rel (%p387) target = $region72
    $region71: #{transformer_decoder_only_forward.3} parent=5 // pred_region
      %s391 = ssub.s32 %s19, 1
      %p392 = scmp.lt.s32.totalorder %s24, 1
      %s393 = scalar_select %p392, %s24, 1
      %s394 = smul.addr %s393, 8
      %s395 = scalar_lea.vmem %s0, %s394
      %p396 = pneg %p45
      %p397 = pneg %p42
      %p398 = pneg %p66
      %p399 = pneg %p63
      %p400 = pneg %p87
      %p401 = pneg %p84
      %p402 = pneg %p108
      %p403 = pneg %p105
      %p404 = pneg %p129
      %p405 = pneg %p126
      %p406 = pneg %p150
      %p407 = pneg %p147
      %p408 = pneg %p171
      %p409 = pneg %p168
      %p410 = pneg %p192
      %p411 = pneg %p189
      %p412 = pneg %p213
      %p413 = pneg %p210
      %p414 = pneg %p234
      %p415 = pneg %p231
      %p416 = pneg %p255
      %p417 = pneg %p252
      %p418 = pneg %p276
      %p419 = pneg %p273
      %p420 = pneg %p297
      %p421 = pneg %p294
      %p422 = pneg %p323
      %p423 = pneg %p320
      %p424 = scmp.lt.s32.totalorder %s24, 1
      %s425 = scalar_select %p424, %s24, 1
      %s426 = smul.addr %s425, 8
      %s427 = scalar_lea.vmem %s13, %s426
      %p428 = scmp.lt.s32.totalorder %s24, 1
      %s429 = scalar_select %p428, %s24, 1
      %s430 = smul.addr %s429, 8
      %s431 = scalar_lea.vmem %s0, %s430
      %p432 = scmp.lt.s32.totalorder %s24, 1
      %s433 = scalar_select %p432, %s24, 1
      %s434 = smul.addr %s433, 8
      %s435 = scalar_lea.vmem %s13, %s434
      %v437 = vld [vmem:[%s431] sm:$0xff]
      %v438 = vpack.c.bf16 %v437, %v437
      %v439 = vld [vmem:[%s1] sm:$0xf]
      %v440 = vld [vmem:[%s1 + $0x4] sm:$0xf]
      %v441 = vld [vmem:[%s1 + $0x8] sm:$0xf]
      %v442 = vld [vmem:[%s1 + $0xc] sm:$0xf]
      %v443 = vld [vmem:[%s2] sm:$0x1]
      %v445 = vlaneseq
      %v446 = vshrl.u32 %v445, 7
      %v447 = vsub.s32 0, %v446
      %v448 = vrot.slane %v443, %v447
      %v454 = vunpack.c.l.b16 %v439
      %v455 = vunpack.c.l.b16 %v440
      %v456 = vunpack.c.l.b16 %v441
      %v457 = vunpack.c.l.b16 %v442
      %v458 = vpack.c.b16 %v455, %v454
      %v459 = vpack.c.b16 %v457, %v456
      %vm462 = vcmask 261120
      %v464 = vsel %vm462, %v438, 0
      %466 = vmatprep.subr.bf16.mxu0 0
      %467 = vmatpush1.bf16.msra.mxu0 0
      %468 = vmatprep.subr.bf16.mxu0 0
      %469 = vmatpush1.bf16.msra.mxu0 0
      %470 = vmatprep.subr.bf16.mxu0 0
      %471 = vmatpush1.bf16.msra.mxu0 0
      %472 = vmatprep.subr.bf16.mxu0 0
      %473 = vmatpush1.bf16.msra.mxu0 0
      %474 = vmatprep.subr.bf16.mxu0 0
      %475 = vmatpush1.bf16.msra.mxu0 0
      %476 = vmatprep.subr.bf16.mxu0 0
      %477 = vmatpush1.bf16.msra.mxu0 0
      %478 = vmatprep.subr.bf16.mxu0 0
      %479 = vmatpush1.bf16.msra.mxu0 %v459
      %480 = vmatprep.subr.bf16.mxu0 0
      %481 = vmatpush1.bf16.msra.mxu0 %v458
      %482 = vmatprep.subr.bf16.mxu0 0
      %483 = vmatpush2.bf16.msra.mxu0 0
      %484 = vmatprep.subr.bf16.mxu0 0
      %485 = vmatpush2.bf16.msra.mxu0 0
      %486 = vmatprep.subr.bf16.mxu0 0
      %487 = vmatpush2.bf16.msra.mxu0 0
      %488 = vmatprep.subr.bf16.mxu0 0
      %489 = vmatpush2.bf16.msra.mxu0 0
      %490 = vmatprep.subr.bf16.mxu0 0
      %491 = vmatpush2.bf16.msra.mxu0 0
      %492 = vmatprep.subr.bf16.mxu0 0
      %493 = vmatpush2.bf16.msra.mxu0 0
      %494 = vmatprep.subr.bf16.mxu0 0
      %495 = vmatpush2.bf16.msra.mxu0 0
      %496 = vmatprep.subr.bf16.mxu0 0
      %497 = vmatpush2.bf16.msra.mxu0 0
      %498 = vmatprep.mubr.bf16.mxu0 0
      %499 = vmatmul.mubr.bf16.gmra.mxu0 %v464
      %v500 = vpop.f32.mrf.mxu0
      %v501 = vadd.f32 %v448, %v500
      %v502 = vpop.f32.mrf.mxu0
      %v503 = vpop.f32.mrf.mxu0
      %v504 = vpop.f32.mrf.mxu0
      %505 = vdwg.mxu0
      %v506 = vlaneseq
      %v507 = vshrl.u32 %v506, 7
      %v508 = vlaneseq
      %v509 = vand.u32 %v508, 127
      %vm510 = vcmp.ge.s32.totalorder %v507, %v509
      %512 = vrot.lane.b32.xlu0 %v501, 120
      %v513 = vpop.permute.xlu0 %512
      %515 = vrot.lane.b32.xlu0 %v501, 112
      %v516 = vpop.permute.xlu0 %515
      %518 = vrot.lane.b32.xlu0 %v501, 104
      %v519 = vpop.permute.xlu0 %518
      %521 = vrot.lane.b32.xlu0 %v501, 96
      %v522 = vpop.permute.xlu0 %521
      %524 = vrot.lane.b32.xlu0 %v501, 88
      %v525 = vpop.permute.xlu0 %524
      %527 = vrot.lane.b32.xlu0 %v501, 80
      %v528 = vpop.permute.xlu0 %527
      %530 = vrot.lane.b32.xlu0 %v501, 72
      %v531 = vpop.permute.xlu0 %530
      %533 = vrot.lane.b32.xlu0 %v501, 64
      %v534 = vpop.permute.xlu0 %533
      %536 = vrot.lane.b32.xlu0 %v501, 56
      %v537 = vpop.permute.xlu0 %536
      %539 = vrot.lane.b32.xlu0 %v501, 48
      %v540 = vpop.permute.xlu0 %539
      %542 = vrot.lane.b32.xlu0 %v501, 40
      %v543 = vpop.permute.xlu0 %542
      %v545 = vcombine.low %v501, %v516
      %v546 = vcombine.high %v501, %v516
      %v548 = vunpack.c.l.s4 1983009808
      %v549 = vunpack.c.0.s8 %v548
      %v550 = vlaneseq
      %v551 = vshrl.u32 %v550, 7
      %v552 = vsub.s32 %v549, %v551
      %v553 = vrot.slane %v545, %v552
      %v555 = vunpack.c.l.s4 1983009808
      %v556 = vunpack.c.0.s8 %v555
      %v557 = vlaneseq
      %v558 = vshrl.u32 %v557, 7
      %v559 = vsub.s32 %v556, %v558
      %v560 = vrot.slane %v546, %v559
      %v561 = vcombine.low %v513, %v519
      %v562 = vcombine.high %v513, %v519
      %v564 = vunpack.c.l.s4 1983009808
      %v565 = vunpack.c.0.s8 %v564
      %v566 = vlaneseq
      %v567 = vshrl.u32 %v566, 7
      %v568 = vsub.s32 %v565, %v567
      %v569 = vrot.slane %v561, %v568
      %v571 = vunpack.c.l.s4 1983009808
      %v572 = vunpack.c.0.s8 %v571
      %v573 = vlaneseq
      %v574 = vshrl.u32 %v573, 7
      %v575 = vsub.s32 %v572, %v574
      %v576 = vrot.slane %v562, %v575
      %v577 = vcombine.low %v522, %v528
      %v578 = vcombine.high %v522, %v528
      %v580 = vunpack.c.l.s4 1983009808
      %v581 = vunpack.c.0.s8 %v580
      %v582 = vlaneseq
      %v583 = vshrl.u32 %v582, 7
      %v584 = vsub.s32 %v581, %v583
      %v585 = vrot.slane %v577, %v584
      %v587 = vunpack.c.l.s4 1983009808
      %v588 = vunpack.c.0.s8 %v587
      %v589 = vlaneseq
      %v590 = vshrl.u32 %v589, 7
      %v591 = vsub.s32 %v588, %v590
      %v592 = vrot.slane %v578, %v591
      %v593 = vcombine.low %v525, %v531
      %v594 = vcombine.high %v525, %v531
      %v596 = vunpack.c.l.s4 1983009808
      %v597 = vunpack.c.0.s8 %v596
      %v598 = vlaneseq
      %v599 = vshrl.u32 %v598, 7
      %v600 = vsub.s32 %v597, %v599
      %v601 = vrot.slane %v593, %v600
      %v603 = vunpack.c.l.s4 1983009808
      %v604 = vunpack.c.0.s8 %v603
      %v605 = vlaneseq
      %v606 = vshrl.u32 %v605, 7
      %v607 = vsub.s32 %v604, %v606
      %v608 = vrot.slane %v594, %v607
      %v609 = vcombine.low %v553, %v569
      %v610 = vcombine.high %v553, %v569
      %v612 = vunpack.c.l.s4 1934713408
      %v613 = vunpack.c.0.s8 %v612
      %v614 = vlaneseq
      %v615 = vshrl.u32 %v614, 7
      %v616 = vsub.s32 %v613, %v615
      %v617 = vrot.slane %v609, %v616
      %v619 = vunpack.c.l.s4 1934713408
      %v620 = vunpack.c.0.s8 %v619
      %v621 = vlaneseq
      %v622 = vshrl.u32 %v621, 7
      %v623 = vsub.s32 %v620, %v622
      %v624 = vrot.slane %v610, %v623
      %v625 = vcombine.low %v560, %v576
      %v626 = vcombine.high %v560, %v576
      %v628 = vunpack.c.l.s4 1934713408
      %v629 = vunpack.c.0.s8 %v628
      %v630 = vlaneseq
      %v631 = vshrl.u32 %v630, 7
      %v632 = vsub.s32 %v629, %v631
      %v633 = vrot.slane %v625, %v632
      %v635 = vunpack.c.l.s4 1934713408
      %v636 = vunpack.c.0.s8 %v635
      %v637 = vlaneseq
      %v638 = vshrl.u32 %v637, 7
      %v639 = vsub.s32 %v636, %v638
      %v640 = vrot.slane %v626, %v639
      %v641 = vcombine.low %v585, %v601
      %v642 = vcombine.high %v585, %v601
      %v644 = vunpack.c.l.s4 1934713408
      %v645 = vunpack.c.0.s8 %v644
      %v646 = vlaneseq
      %v647 = vshrl.u32 %v646, 7
      %v648 = vsub.s32 %v645, %v647
      %v649 = vrot.slane %v641, %v648
      %v651 = vunpack.c.l.s4 1934713408
      %v652 = vunpack.c.0.s8 %v651
      %v653 = vlaneseq
      %v654 = vshrl.u32 %v653, 7
      %v655 = vsub.s32 %v652, %v654
      %v656 = vrot.slane %v642, %v655
      %v657 = vcombine.low %v592, %v608
      %v658 = vcombine.high %v592, %v608
      %v660 = vunpack.c.l.s4 1934713408
      %v661 = vunpack.c.0.s8 %v660
      %v662 = vlaneseq
      %v663 = vshrl.u32 %v662, 7
      %v664 = vsub.s32 %v661, %v663
      %v665 = vrot.slane %v657, %v664
      %v667 = vunpack.c.l.s4 1934713408
      %v668 = vunpack.c.0.s8 %v667
      %v669 = vlaneseq
      %v670 = vshrl.u32 %v669, 7
      %v671 = vsub.s32 %v668, %v670
      %v672 = vrot.slane %v658, %v671
      %v673 = vcombine.low %v617, %v649
      %v674 = vcombine.high %v617, %v649
      %v675 = vcombine.low %v624, %v656
      %v676 = vcombine.high %v624, %v656
      %v677 = vcombine.low %v633, %v665
      %v678 = vcombine.high %v633, %v665
      %v679 = vcombine.low %v640, %v672
      %v680 = vcombine.high %v640, %v672
      %v681 = vcombine.low %v534, %v540
      %v682 = vcombine.high %v534, %v540
      %v684 = vunpack.c.l.s4 1983009808
      %v685 = vunpack.c.0.s8 %v684
      %v686 = vlaneseq
      %v687 = vshrl.u32 %v686, 7
      %v688 = vsub.s32 %v685, %v687
      %v689 = vrot.slane %v681, %v688
      %v691 = vunpack.c.l.s4 1983009808
      %v692 = vunpack.c.0.s8 %v691
      %v693 = vlaneseq
      %v694 = vshrl.u32 %v693, 7
      %v695 = vsub.s32 %v692, %v694
      %v696 = vrot.slane %v682, %v695
      %v697 = vcombine.low %v537, %v543
      %v698 = vcombine.high %v537, %v543
      %v700 = vunpack.c.l.s4 1983009808
      %v701 = vunpack.c.0.s8 %v700
      %v702 = vlaneseq
      %v703 = vshrl.u32 %v702, 7
      %v704 = vsub.s32 %v701, %v703
      %v705 = vrot.slane %v697, %v704
      %v707 = vunpack.c.l.s4 1983009808
      %v708 = vunpack.c.0.s8 %v707
      %v709 = vlaneseq
      %v710 = vshrl.u32 %v709, 7
      %v711 = vsub.s32 %v708, %v710
      %v712 = vrot.slane %v698, %v711
      %v713 = vcombine.low %v689, %v705
      %v714 = vcombine.high %v689, %v705
      %v716 = vunpack.c.l.s4 1934713408
      %v717 = vunpack.c.0.s8 %v716
      %v718 = vlaneseq
      %v719 = vshrl.u32 %v718, 7
      %v720 = vsub.s32 %v717, %v719
      %v721 = vrot.slane %v713, %v720
      %v723 = vunpack.c.l.s4 1934713408
      %v724 = vunpack.c.0.s8 %v723
      %v725 = vlaneseq
      %v726 = vshrl.u32 %v725, 7
      %v727 = vsub.s32 %v724, %v726
      %v728 = vrot.slane %v714, %v727
      %v729 = vcombine.low %v696, %v712
      %v730 = vcombine.high %v696, %v712
      %v732 = vunpack.c.l.s4 1934713408
      %v733 = vunpack.c.0.s8 %v732
      %v734 = vlaneseq
      %v735 = vshrl.u32 %v734, 7
      %v736 = vsub.s32 %v733, %v735
      %v737 = vrot.slane %v729, %v736
      %v739 = vunpack.c.l.s4 1934713408
      %v740 = vunpack.c.0.s8 %v739
      %v741 = vlaneseq
      %v742 = vshrl.u32 %v741, 7
      %v743 = vsub.s32 %v740, %v742
      %v744 = vrot.slane %v730, %v743
      %v745 = vcombine.high %v721, 0.0
      %v746 = vcombine.high %v728, 0.0
      %v747 = vcombine.high %v737, 0.0
      %v748 = vcombine.high %v744, 0.0
      %v749 = vcombine.low %v673, %v675
      %v750 = vcombine.high %v673, %v675
      %v752 = vunpack.c.l.s4 1983009808
      %v753 = vunpack.c.0.s8 %v752
      %v754 = vlaneseq
      %v755 = vshrl.u32 %v754, 7
      %v756 = vsub.s32 %v753, %v755
      %v757 = vrot.slane %v749, %v756
      %v759 = vunpack.c.l.s4 1983009808
      %v760 = vunpack.c.0.s8 %v759
      %v761 = vlaneseq
      %v762 = vshrl.u32 %v761, 7
      %v763 = vsub.s32 %v760, %v762
      %v764 = vrot.slane %v750, %v763
      %v765 = vcombine.low %v674, %v676
      %v766 = vcombine.high %v674, %v676
      %v768 = vunpack.c.l.s4 1983009808
      %v769 = vunpack.c.0.s8 %v768
      %v770 = vlaneseq
      %v771 = vshrl.u32 %v770, 7
      %v772 = vsub.s32 %v769, %v771
      %v773 = vrot.slane %v765, %v772
      %v775 = vunpack.c.l.s4 1983009808
      %v776 = vunpack.c.0.s8 %v775
      %v777 = vlaneseq
      %v778 = vshrl.u32 %v777, 7
      %v779 = vsub.s32 %v776, %v778
      %v780 = vrot.slane %v766, %v779
      %v781 = vcombine.low %v677, %v679
      %v782 = vcombine.high %v677, %v679
      %v784 = vunpack.c.l.s4 1983009808
      %v785 = vunpack.c.0.s8 %v784
      %v786 = vlaneseq
      %v787 = vshrl.u32 %v786, 7
      %v788 = vsub.s32 %v785, %v787
      %v789 = vrot.slane %v781, %v788
      %v791 = vunpack.c.l.s4 1983009808
      %v792 = vunpack.c.0.s8 %v791
      %v793 = vlaneseq
      %v794 = vshrl.u32 %v793, 7
      %v795 = vsub.s32 %v792, %v794
      %v796 = vrot.slane %v782, %v795
      %v797 = vcombine.low %v678, %v680
      %v798 = vcombine.high %v678, %v680
      %v800 = vunpack.c.l.s4 1983009808
      %v801 = vunpack.c.0.s8 %v800
      %v802 = vlaneseq
      %v803 = vshrl.u32 %v802, 7
      %v804 = vsub.s32 %v801, %v803
      %v805 = vrot.slane %v797, %v804
      %v807 = vunpack.c.l.s4 1983009808
      %v808 = vunpack.c.0.s8 %v807
      %v809 = vlaneseq
      %v810 = vshrl.u32 %v809, 7
      %v811 = vsub.s32 %v808, %v810
      %v812 = vrot.slane %v798, %v811
      %v813 = vcombine.low %v757, %v773
      %v814 = vcombine.high %v757, %v773
      %v816 = vunpack.c.l.s4 1934713408
      %v817 = vunpack.c.0.s8 %v816
      %v818 = vlaneseq
      %v819 = vshrl.u32 %v818, 7
      %v820 = vsub.s32 %v817, %v819
      %v821 = vrot.slane %v813, %v820
      %v823 = vunpack.c.l.s4 1934713408
      %v824 = vunpack.c.0.s8 %v823
      %v825 = vlaneseq
      %v826 = vshrl.u32 %v825, 7
      %v827 = vsub.s32 %v824, %v826
      %v828 = vrot.slane %v814, %v827
      %v829 = vcombine.low %v764, %v780
      %v830 = vcombine.high %v764, %v780
      %v832 = vunpack.c.l.s4 1934713408
      %v833 = vunpack.c.0.s8 %v832
      %v834 = vlaneseq
      %v835 = vshrl.u32 %v834, 7
      %v836 = vsub.s32 %v833, %v835
      %v837 = vrot.slane %v829, %v836
      %v839 = vunpack.c.l.s4 1934713408
      %v840 = vunpack.c.0.s8 %v839
      %v841 = vlaneseq
      %v842 = vshrl.u32 %v841, 7
      %v843 = vsub.s32 %v840, %v842
      %v844 = vrot.slane %v830, %v843
      %v845 = vcombine.low %v789, %v805
      %v846 = vcombine.high %v789, %v805
      %v848 = vunpack.c.l.s4 1934713408
      %v849 = vunpack.c.0.s8 %v848
      %v850 = vlaneseq
      %v851 = vshrl.u32 %v850, 7
      %v852 = vsub.s32 %v849, %v851
      %v853 = vrot.slane %v845, %v852
      %v855 = vunpack.c.l.s4 1934713408
      %v856 = vunpack.c.0.s8 %v855
      %v857 = vlaneseq
      %v858 = vshrl.u32 %v857, 7
      %v859 = vsub.s32 %v856, %v858
      %v860 = vrot.slane %v846, %v859
      %v861 = vcombine.low %v796, %v812
      %v862 = vcombine.high %v796, %v812
      %v864 = vunpack.c.l.s4 1934713408
      %v865 = vunpack.c.0.s8 %v864
      %v866 = vlaneseq
      %v867 = vshrl.u32 %v866, 7
      %v868 = vsub.s32 %v865, %v867
      %v869 = vrot.slane %v861, %v868
      %v871 = vunpack.c.l.s4 1934713408
      %v872 = vunpack.c.0.s8 %v871
      %v873 = vlaneseq
      %v874 = vshrl.u32 %v873, 7
      %v875 = vsub.s32 %v872, %v874
      %v876 = vrot.slane %v862, %v875
      %v877 = vcombine.low %v821, %v853
      %v878 = vcombine.high %v821, %v853
      %v879 = vcombine.low %v828, %v860
      %v880 = vcombine.high %v828, %v860
      %v881 = vcombine.low %v837, %v869
      %v882 = vcombine.high %v837, %v869
      %v883 = vcombine.low %v844, %v876
      %v884 = vcombine.high %v844, %v876
      %v885 = vcombine.low %v721, %v728
      %v887 = vunpack.c.l.s4 1983009808
      %v888 = vunpack.c.0.s8 %v887
      %v889 = vlaneseq
      %v890 = vshrl.u32 %v889, 7
      %v891 = vsub.s32 %v888, %v890
      %v892 = vrot.slane %v885, %v891
      %v893 = vcombine.low %v745, %v746
      %v895 = vunpack.c.l.s4 1983009808
      %v896 = vunpack.c.0.s8 %v895
      %v897 = vlaneseq
      %v898 = vshrl.u32 %v897, 7
      %v899 = vsub.s32 %v896, %v898
      %v900 = vrot.slane %v893, %v899
      %v901 = vcombine.low %v737, %v744
      %v903 = vunpack.c.l.s4 1983009808
      %v904 = vunpack.c.0.s8 %v903
      %v905 = vlaneseq
      %v906 = vshrl.u32 %v905, 7
      %v907 = vsub.s32 %v904, %v906
      %v908 = vrot.slane %v901, %v907
      %v909 = vcombine.low %v747, %v748
      %v911 = vunpack.c.l.s4 1983009808
      %v912 = vunpack.c.0.s8 %v911
      %v913 = vlaneseq
      %v914 = vshrl.u32 %v913, 7
      %v915 = vsub.s32 %v912, %v914
      %v916 = vrot.slane %v909, %v915
      %v917 = vcombine.low %v892, %v900
      %v918 = vcombine.high %v892, %v900
      %v920 = vunpack.c.l.s4 1934713408
      %v921 = vunpack.c.0.s8 %v920
      %v922 = vlaneseq
      %v923 = vshrl.u32 %v922, 7
      %v924 = vsub.s32 %v921, %v923
      %v925 = vrot.slane %v917, %v924
      %v927 = vunpack.c.l.s4 1934713408
      %v928 = vunpack.c.0.s8 %v927
      %v929 = vlaneseq
      %v930 = vshrl.u32 %v929, 7
      %v931 = vsub.s32 %v928, %v930
      %v932 = vrot.slane %v918, %v931
      %v933 = vcombine.low %v908, %v916
      %v934 = vcombine.high %v908, %v916
      %v936 = vunpack.c.l.s4 1934713408
      %v937 = vunpack.c.0.s8 %v936
      %v938 = vlaneseq
      %v939 = vshrl.u32 %v938, 7
      %v940 = vsub.s32 %v937, %v939
      %v941 = vrot.slane %v933, %v940
      %v943 = vunpack.c.l.s4 1934713408
      %v944 = vunpack.c.0.s8 %v943
      %v945 = vlaneseq
      %v946 = vshrl.u32 %v945, 7
      %v947 = vsub.s32 %v944, %v946
      %v948 = vrot.slane %v934, %v947
      %v949 = vcombine.low %v925, %v941
      %v950 = vcombine.high %v925, %v941
      %v951 = vcombine.low %v932, %v948
      %v952 = vcombine.high %v932, %v948
      %v953 = vpack.c.bf16 %v877, %v877
      %v954 = vpack.c.bf16 %v878, %v878
      %v955 = vpack.c.bf16 %v879, %v879
      %v956 = vpack.c.bf16 %v880, %v880
      %v957 = vpack.c.bf16 %v881, %v881
      %v958 = vpack.c.bf16 %v882, %v882
      %v959 = vpack.c.bf16 %v883, %v883
      %v960 = vpack.c.bf16 %v884, %v884
      %v961 = vpack.c.bf16 %v949, %v949
      %v962 = vpack.c.bf16 %v950, %v950
      %v963 = vpack.c.bf16 %v951, %v951
      %v964 = vpack.c.bf16 %v952, %v952
      %vm965 = vcmask 64512
      %v967 = vsel %vm965, %v953, 0
      %v970 = vsel %vm965, %v957, 0
      %972 = vmatprep.subr.bf16.mxu0 0
      %973 = vmatpush1.bf16.xpose.msra.mxu0 0
      %974 = vmatprep.subr.bf16.mxu0 0
      %975 = vmatpush1.bf16.xpose.msra.mxu0 0
      %976 = vmatprep.subr.bf16.mxu0 0
      %977 = vmatpush1.bf16.xpose.msra.mxu0 0
      %978 = vmatprep.subr.bf16.mxu0 0
      %979 = vmatpush1.bf16.xpose.msra.mxu0 0
      %980 = vmatprep.subr.bf16.mxu0 0
      %981 = vmatpush1.bf16.xpose.msra.mxu0 0
      %982 = vmatprep.subr.bf16.mxu0 0
      %983 = vmatpush1.bf16.xpose.msra.mxu0 0
      %984 = vmatprep.subr.bf16.mxu0 0
      %985 = vmatpush1.bf16.xpose.msra.mxu0 0
      %986 = vmatprep.subr.bf16.mxu0 0
      %987 = vmatpush1.bf16.xpose.msra.mxu0 %v970
      %988 = vmatprep.subr.bf16.mxu0 0
      %989 = vmatpush2.bf16.xpose.msra.mxu0 0
      %990 = vmatprep.subr.bf16.mxu0 0
      %991 = vmatpush2.bf16.xpose.msra.mxu0 0
      %992 = vmatprep.subr.bf16.mxu0 0
      %993 = vmatpush2.bf16.xpose.msra.mxu0 0
      %994 = vmatprep.subr.bf16.mxu0 0
      %995 = vmatpush2.bf16.xpose.msra.mxu0 0
      %996 = vmatprep.subr.bf16.mxu0 0
      %997 = vmatpush2.bf16.xpose.msra.mxu0 0
      %998 = vmatprep.subr.bf16.mxu0 0
      %999 = vmatpush2.bf16.xpose.msra.mxu0 0
      %1000 = vmatprep.subr.bf16.mxu0 0
      %1001 = vmatpush2.bf16.xpose.msra.mxu0 0
      %1002 = vmatprep.subr.bf16.mxu0 0
      %1003 = vmatpush2.bf16.xpose.msra.mxu0 0
      %1004 = vmatprep.mubr.bf16.mxu0 0
      %1005 = vmatmul.mubr.bf16.gmra.mxu0 %v967
      %v1006 = vpop.f32.mrf.mxu0
      %v1007 = vadd.f32 0.0, %v1006
      %v1008 = vpop.f32.mrf.mxu0
      %v1009 = vpop.f32.mrf.mxu0
      %v1010 = vpop.f32.mrf.mxu0
      %1011 = vdwg.mxu0
      %v1013 = vsel %vm965, %v954, 0
      %v1016 = vsel %vm965, %v958, 0
      %1018 = vmatprep.subr.bf16.mxu0 0
      %1019 = vmatpush1.bf16.xpose.msra.mxu0 0
      %1020 = vmatprep.subr.bf16.mxu0 0
      %1021 = vmatpush1.bf16.xpose.msra.mxu0 0
      %1022 = vmatprep.subr.bf16.mxu0 0
      %1023 = vmatpush1.bf16.xpose.msra.mxu0 0
      %1024 = vmatprep.subr.bf16.mxu0 0
      %1025 = vmatpush1.bf16.xpose.msra.mxu0 0
      %1026 = vmatprep.subr.bf16.mxu0 0
      %1027 = vmatpush1.bf16.xpose.msra.mxu0 0
      %1028 = vmatprep.subr.bf16.mxu0 0
      %1029 = vmatpush1.bf16.xpose.msra.mxu0 0
      %1030 = vmatprep.subr.bf16.mxu0 0
      %1031 = vmatpush1.bf16.xpose.msra.mxu0 0
      %1032 = vmatprep.subr.bf16.mxu0 0
      %1033 = vmatpush1.bf16.xpose.msra.mxu0 %v1016
      %1034 = vmatprep.subr.bf16.mxu0 0
      %1035 = vmatpush2.bf16.xpose.msra.mxu0 0
      %1036 = vmatprep.subr.bf16.mxu0 0
      %1037 = vmatpush2.bf16.xpose.msra.mxu0 0
      %1038 = vmatprep.subr.bf16.mxu0 0
      %1039 = vmatpush2.bf16.xpose.msra.mxu0 0
      %1040 = vmatprep.subr.bf16.mxu0 0
      %1041 = vmatpush2.bf16.xpose.msra.mxu0 0
      %1042 = vmatprep.subr.bf16.mxu0 0
      %1043 = vmatpush2.bf16.xpose.msra.mxu0 0
      %1044 = vmatprep.subr.bf16.mxu0 0
      %1045 = vmatpush2.bf16.xpose.msra.mxu0 0
      %1046 = vmatprep.subr.bf16.mxu0 0
      %1047 = vmatpush2.bf16.xpose.msra.mxu0 0
      %1048 = vmatprep.subr.bf16.mxu0 0
      %1049 = vmatpush2.bf16.xpose.msra.mxu0 0
      %1050 = vmatprep.mubr.bf16.mxu0 0
      %1051 = vmatmul.mubr.bf16.gmra.mxu0 %v1013
      %v1052 = vpop.f32.mrf.mxu0
      %v1053 = vadd.f32 0.0, %v1052
      %v1054 = vpop.f32.mrf.mxu0
      %v1055 = vpop.f32.mrf.mxu0
      %v1056 = vpop.f32.mrf.mxu0
      %1057 = vdwg.mxu0
      %v1059 = vsel %vm965, %v955, 0
      %v1062 = vsel %vm965, %v959, 0
      %1064 = vmatprep.subr.bf16.mxu0 0
      %1065 = vmatpush1.bf16.xpose.msra.mxu0 0
      %1066 = vmatprep.subr.bf16.mxu0 0
      %1067 = vmatpush1.bf16.xpose.msra.mxu0 0
      %1068 = vmatprep.subr.bf16.mxu0 0
      %1069 = vmatpush1.bf16.xpose.msra.mxu0 0
      %1070 = vmatprep.subr.bf16.mxu0 0
      %1071 = vmatpush1.bf16.xpose.msra.mxu0 0
      %1072 = vmatprep.subr.bf16.mxu0 0
      %1073 = vmatpush1.bf16.xpose.msra.mxu0 0
      %1074 = vmatprep.subr.bf16.mxu0 0
      %1075 = vmatpush1.bf16.xpose.msra.mxu0 0
      %1076 = vmatprep.subr.bf16.mxu0 0
      %1077 = vmatpush1.bf16.xpose.msra.mxu0 0
      %1078 = vmatprep.subr.bf16.mxu0 0
      %1079 = vmatpush1.bf16.xpose.msra.mxu0 %v1062
      %1080 = vmatprep.subr.bf16.mxu0 0
      %1081 = vmatpush2.bf16.xpose.msra.mxu0 0
      %1082 = vmatprep.subr.bf16.mxu0 0
      %1083 = vmatpush2.bf16.xpose.msra.mxu0 0
      %1084 = vmatprep.subr.bf16.mxu0 0
      %1085 = vmatpush2.bf16.xpose.msra.mxu0 0
      %1086 = vmatprep.subr.bf16.mxu0 0
      %1087 = vmatpush2.bf16.xpose.msra.mxu0 0
      %1088 = vmatprep.subr.bf16.mxu0 0
      %1089 = vmatpush2.bf16.xpose.msra.mxu0 0
      %1090 = vmatprep.subr.bf16.mxu0 0
      %1091 = vmatpush2.bf16.xpose.msra.mxu0 0
      %1092 = vmatprep.subr.bf16.mxu0 0
      %1093 = vmatpush2.bf16.xpose.msra.mxu0 0
      %1094 = vmatprep.subr.bf16.mxu0 0
      %1095 = vmatpush2.bf16.xpose.msra.mxu0 0
      %1096 = vmatprep.mubr.bf16.mxu0 0
      %1097 = vmatmul.mubr.bf16.gmra.mxu0 %v1059
      %v1098 = vpop.f32.mrf.mxu0
      %v1099 = vadd.f32 0.0, %v1098
      %v1100 = vpop.f32.mrf.mxu0
      %v1101 = vpop.f32.mrf.mxu0
      %v1102 = vpop.f32.mrf.mxu0
      %1103 = vdwg.mxu0
      %v1105 = vsel %vm965, %v956, 0
      %v1108 = vsel %vm965, %v960, 0
      %1110 = vmatprep.subr.bf16.mxu0 0
      %1111 = vmatpush1.bf16.xpose.msra.mxu0 0
      %1112 = vmatprep.subr.bf16.mxu0 0
      %1113 = vmatpush1.bf16.xpose.msra.mxu0 0
      %1114 = vmatprep.subr.bf16.mxu0 0
      %1115 = vmatpush1.bf16.xpose.msra.mxu0 0
      %1116 = vmatprep.subr.bf16.mxu0 0
      %1117 = vmatpush1.bf16.xpose.msra.mxu0 0
      %1118 = vmatprep.subr.bf16.mxu0 0
      %1119 = vmatpush1.bf16.xpose.msra.mxu0 0
      %1120 = vmatprep.subr.bf16.mxu0 0
      %1121 = vmatpush1.bf16.xpose.msra.mxu0 0
      %1122 = vmatprep.subr.bf16.mxu0 0
      %1123 = vmatpush1.bf16.xpose.msra.mxu0 0
      %1124 = vmatprep.subr.bf16.mxu0 0
      %1125 = vmatpush1.bf16.xpose.msra.mxu0 %v1108
      %1126 = vmatprep.subr.bf16.mxu0 0
      %1127 = vmatpush2.bf16.xpose.msra.mxu0 0
      %1128 = vmatprep.subr.bf16.mxu0 0
      %1129 = vmatpush2.bf16.xpose.msra.mxu0 0
      %1130 = vmatprep.subr.bf16.mxu0 0
      %1131 = vmatpush2.bf16.xpose.msra.mxu0 0
      %1132 = vmatprep.subr.bf16.mxu0 0
      %1133 = vmatpush2.bf16.xpose.msra.mxu0 0
      %1134 = vmatprep.subr.bf16.mxu0 0
      %1135 = vmatpush2.bf16.xpose.msra.mxu0 0
      %1136 = vmatprep.subr.bf16.mxu0 0
      %1137 = vmatpush2.bf16.xpose.msra.mxu0 0
      %1138 = vmatprep.subr.bf16.mxu0 0
      %1139 = vmatpush2.bf16.xpose.msra.mxu0 0
      %1140 = vmatprep.subr.bf16.mxu0 0
      %1141 = vmatpush2.bf16.xpose.msra.mxu0 0
      %1142 = vmatprep.mubr.bf16.mxu0 0
      %1143 = vmatmul.mubr.bf16.gmra.mxu0 %v1105
      %v1144 = vpop.f32.mrf.mxu0
      %v1145 = vadd.f32 0.0, %v1144
      %v1146 = vpop.f32.mrf.mxu0
      %v1147 = vpop.f32.mrf.mxu0
      %v1148 = vpop.f32.mrf.mxu0
      %1149 = vdwg.mxu0
      %v1150 = vsel %vm510, 1, 0
      %vm1151 = vcmp.eq.s32.totalorder %v1150, 1
      %v1152 = vsel %vm1151, %v1007, -1e+30
      %v1153 = vsel %vm1151, %v1053, -1e+30
      %v1154 = vsel %vm1151, %v1099, -1e+30
      %v1155 = vsel %vm1151, %v1145, -1e+30
      %v1156 = vsel %vm965, %v1152, -inf
      %1157 = vmax.xlane.f32.xlu0 %v1156
      %v1158 = vpop.xlane.xlu0 %1157
      %v1159 = vsel %vm965, %v1153, -inf
      %1160 = vmax.xlane.f32.xlu0 %v1159
      %v1161 = vpop.xlane.xlu0 %1160
      %v1162 = vsel %vm965, %v1154, -inf
      %1163 = vmax.xlane.f32.xlu0 %v1162
      %v1164 = vpop.xlane.xlu0 %1163
      %v1165 = vsel %vm965, %v1155, -inf
      %1166 = vmax.xlane.f32.xlu0 %v1165
      %v1167 = vpop.xlane.xlu0 %1166
      %v1168 = vsub.f32 %v1152, %v1158
      %v1169 = vsub.f32 %v1153, %v1161
      %v1170 = vsub.f32 %v1154, %v1164
      %v1171 = vsub.f32 %v1155, %v1167
      %v1172 = vmul.f32 %v1168, 1.442695
      %v1173 = vpow.pop %v1172
      %v1174 = vmul.f32 %v1169, 1.442695
      %v1175 = vpow.pop %v1174
      %v1176 = vmul.f32 %v1170, 1.442695
      %v1177 = vpow.pop %v1176
      %v1178 = vmul.f32 %v1171, 1.442695
      %v1179 = vpow.pop %v1178
      %v1180 = vsel %vm965, %v1173, 0.0
      %1181 = vadd.xlane.f32.xlu0 %v1180
      %v1182 = vpop.xlane.xlu0 %1181
      %v1183 = vsel %vm965, %v1175, 0.0
      %1184 = vadd.xlane.f32.xlu0 %v1183
      %v1185 = vpop.xlane.xlu0 %1184
      %v1186 = vsel %vm965, %v1177, 0.0
      %1187 = vadd.xlane.f32.xlu0 %v1186
      %v1188 = vpop.xlane.xlu0 %1187
      %v1189 = vsel %vm965, %v1179, 0.0
      %1190 = vadd.xlane.f32.xlu0 %v1189
      %v1191 = vpop.xlane.xlu0 %1190
      %v1192 = vrcp.pop %v1182
      %v1193 = vmul.f32 %v1173, %v1192
      %v1194 = vrcp.pop %v1185
      %v1195 = vmul.f32 %v1175, %v1194
      %v1196 = vrcp.pop %v1188
      %v1197 = vmul.f32 %v1177, %v1196
      %v1198 = vrcp.pop %v1191
      %v1199 = vmul.f32 %v1179, %v1198
      %v1200 = vpack.c.bf16 %v1193, %v1193
      %v1201 = vpack.c.bf16 %v1195, %v1195
      %v1202 = vpack.c.bf16 %v1197, %v1197
      %v1203 = vpack.c.bf16 %v1199, %v1199
      %v1205 = vsel %vm965, %v1200, 0
      %vm1207 = vcmask 1043456
      %v1209 = vsel %vm1207, %v961, 0
      %1211 = vmatprep.subr.bf16.mxu0 0
      %1212 = vmatpush1.bf16.msra.mxu0 0
      %1213 = vmatprep.subr.bf16.mxu0 0
      %1214 = vmatpush1.bf16.msra.mxu0 0
      %1215 = vmatprep.subr.bf16.mxu0 0
      %1216 = vmatpush1.bf16.msra.mxu0 0
      %1217 = vmatprep.subr.bf16.mxu0 0
      %1218 = vmatpush1.bf16.msra.mxu0 0
      %1219 = vmatprep.subr.bf16.mxu0 0
      %1220 = vmatpush1.bf16.msra.mxu0 0
      %1221 = vmatprep.subr.bf16.mxu0 0
      %1222 = vmatpush1.bf16.msra.mxu0 0
      %1223 = vmatprep.subr.bf16.mxu0 0
      %1224 = vmatpush1.bf16.msra.mxu0 0
      %1225 = vmatprep.subr.bf16.mxu0 0
      %1226 = vmatpush1.bf16.msra.mxu0 %v1209
      %1227 = vmatprep.subr.bf16.mxu0 0
      %1228 = vmatpush2.bf16.msra.mxu0 0
      %1229 = vmatprep.subr.bf16.mxu0 0
      %1230 = vmatpush2.bf16.msra.mxu0 0
      %1231 = vmatprep.subr.bf16.mxu0 0
      %1232 = vmatpush2.bf16.msra.mxu0 0
      %1233 = vmatprep.subr.bf16.mxu0 0
      %1234 = vmatpush2.bf16.msra.mxu0 0
      %1235 = vmatprep.subr.bf16.mxu0 0
      %1236 = vmatpush2.bf16.msra.mxu0 0
      %1237 = vmatprep.subr.bf16.mxu0 0
      %1238 = vmatpush2.bf16.msra.mxu0 0
      %1239 = vmatprep.subr.bf16.mxu0 0
      %1240 = vmatpush2.bf16.msra.mxu0 0
      %1241 = vmatprep.subr.bf16.mxu0 0
      %1242 = vmatpush2.bf16.msra.mxu0 0
      %1243 = vmatprep.mubr.bf16.mxu0 0
      %1244 = vmatmul.mubr.bf16.gmra.mxu0 %v1205
      %v1245 = vpop.f32.mrf.mxu0
      %v1246 = vadd.f32 0.0, %v1245
      %v1247 = vpop.f32.mrf.mxu0
      %v1248 = vpop.f32.mrf.mxu0
      %v1249 = vpop.f32.mrf.mxu0
      %1250 = vdwg.mxu0
      %v1252 = vsel %vm965, %v1201, 0
      %v1255 = vsel %vm1207, %v962, 0
      %1257 = vmatprep.subr.bf16.mxu0 0
      %1258 = vmatpush1.bf16.msra.mxu0 0
      %1259 = vmatprep.subr.bf16.mxu0 0
      %1260 = vmatpush1.bf16.msra.mxu0 0
      %1261 = vmatprep.subr.bf16.mxu0 0
      %1262 = vmatpush1.bf16.msra.mxu0 0
      %1263 = vmatprep.subr.bf16.mxu0 0
      %1264 = vmatpush1.bf16.msra.mxu0 0
      %1265 = vmatprep.subr.bf16.mxu0 0
      %1266 = vmatpush1.bf16.msra.mxu0 0
      %1267 = vmatprep.subr.bf16.mxu0 0
      %1268 = vmatpush1.bf16.msra.mxu0 0
      %1269 = vmatprep.subr.bf16.mxu0 0
      %1270 = vmatpush1.bf16.msra.mxu0 0
      %1271 = vmatprep.subr.bf16.mxu0 0
      %1272 = vmatpush1.bf16.msra.mxu0 %v1255
      %1273 = vmatprep.subr.bf16.mxu0 0
      %1274 = vmatpush2.bf16.msra.mxu0 0
      %1275 = vmatprep.subr.bf16.mxu0 0
      %1276 = vmatpush2.bf16.msra.mxu0 0
      %1277 = vmatprep.subr.bf16.mxu0 0
      %1278 = vmatpush2.bf16.msra.mxu0 0
      %1279 = vmatprep.subr.bf16.mxu0 0
      %1280 = vmatpush2.bf16.msra.mxu0 0
      %1281 = vmatprep.subr.bf16.mxu0 0
      %1282 = vmatpush2.bf16.msra.mxu0 0
      %1283 = vmatprep.subr.bf16.mxu0 0
      %1284 = vmatpush2.bf16.msra.mxu0 0
      %1285 = vmatprep.subr.bf16.mxu0 0
      %1286 = vmatpush2.bf16.msra.mxu0 0
      %1287 = vmatprep.subr.bf16.mxu0 0
      %1288 = vmatpush2.bf16.msra.mxu0 0
      %1289 = vmatprep.mubr.bf16.mxu0 0
      %1290 = vmatmul.mubr.bf16.gmra.mxu0 %v1252
      %v1291 = vpop.f32.mrf.mxu0
      %v1292 = vadd.f32 0.0, %v1291
      %v1293 = vpop.f32.mrf.mxu0
      %v1294 = vpop.f32.mrf.mxu0
      %v1295 = vpop.f32.mrf.mxu0
      %1296 = vdwg.mxu0
      %v1298 = vsel %vm965, %v1202, 0
      %v1301 = vsel %vm1207, %v963, 0
      %1303 = vmatprep.subr.bf16.mxu0 0
      %1304 = vmatpush1.bf16.msra.mxu0 0
      %1305 = vmatprep.subr.bf16.mxu0 0
      %1306 = vmatpush1.bf16.msra.mxu0 0
      %1307 = vmatprep.subr.bf16.mxu0 0
      %1308 = vmatpush1.bf16.msra.mxu0 0
      %1309 = vmatprep.subr.bf16.mxu0 0
      %1310 = vmatpush1.bf16.msra.mxu0 0
      %1311 = vmatprep.subr.bf16.mxu0 0
      %1312 = vmatpush1.bf16.msra.mxu0 0
      %1313 = vmatprep.subr.bf16.mxu0 0
      %1314 = vmatpush1.bf16.msra.mxu0 0
      %1315 = vmatprep.subr.bf16.mxu0 0
      %1316 = vmatpush1.bf16.msra.mxu0 0
      %1317 = vmatprep.subr.bf16.mxu0 0
      %1318 = vmatpush1.bf16.msra.mxu0 %v1301
      %1319 = vmatprep.subr.bf16.mxu0 0
      %1320 = vmatpush2.bf16.msra.mxu0 0
      %1321 = vmatprep.subr.bf16.mxu0 0
      %1322 = vmatpush2.bf16.msra.mxu0 0
      %1323 = vmatprep.subr.bf16.mxu0 0
      %1324 = vmatpush2.bf16.msra.mxu0 0
      %1325 = vmatprep.subr.bf16.mxu0 0
      %1326 = vmatpush2.bf16.msra.mxu0 0
      %1327 = vmatprep.subr.bf16.mxu0 0
      %1328 = vmatpush2.bf16.msra.mxu0 0
      %1329 = vmatprep.subr.bf16.mxu0 0
      %1330 = vmatpush2.bf16.msra.mxu0 0
      %1331 = vmatprep.subr.bf16.mxu0 0
      %1332 = vmatpush2.bf16.msra.mxu0 0
      %1333 = vmatprep.subr.bf16.mxu0 0
      %1334 = vmatpush2.bf16.msra.mxu0 0
      %1335 = vmatprep.mubr.bf16.mxu0 0
      %1336 = vmatmul.mubr.bf16.gmra.mxu0 %v1298
      %v1337 = vpop.f32.mrf.mxu0
      %v1338 = vadd.f32 0.0, %v1337
      %v1339 = vpop.f32.mrf.mxu0
      %v1340 = vpop.f32.mrf.mxu0
      %v1341 = vpop.f32.mrf.mxu0
      %1342 = vdwg.mxu0
      %v1344 = vsel %vm965, %v1203, 0
      %v1347 = vsel %vm1207, %v964, 0
      %1349 = vmatprep.subr.bf16.mxu0 0
      %1350 = vmatpush1.bf16.msra.mxu0 0
      %1351 = vmatprep.subr.bf16.mxu0 0
      %1352 = vmatpush1.bf16.msra.mxu0 0
      %1353 = vmatprep.subr.bf16.mxu0 0
      %1354 = vmatpush1.bf16.msra.mxu0 0
      %1355 = vmatprep.subr.bf16.mxu0 0
      %1356 = vmatpush1.bf16.msra.mxu0 0
      %1357 = vmatprep.subr.bf16.mxu0 0
      %1358 = vmatpush1.bf16.msra.mxu0 0
      %1359 = vmatprep.subr.bf16.mxu0 0
      %1360 = vmatpush1.bf16.msra.mxu0 0
      %1361 = vmatprep.subr.bf16.mxu0 0
      %1362 = vmatpush1.bf16.msra.mxu0 0
      %1363 = vmatprep.subr.bf16.mxu0 0
      %1364 = vmatpush1.bf16.msra.mxu0 %v1347
      %1365 = vmatprep.subr.bf16.mxu0 0
      %1366 = vmatpush2.bf16.msra.mxu0 0
      %1367 = vmatprep.subr.bf16.mxu0 0
      %1368 = vmatpush2.bf16.msra.mxu0 0
      %1369 = vmatprep.subr.bf16.mxu0 0
      %1370 = vmatpush2.bf16.msra.mxu0 0
      %1371 = vmatprep.subr.bf16.mxu0 0
      %1372 = vmatpush2.bf16.msra.mxu0 0
      %1373 = vmatprep.subr.bf16.mxu0 0
      %1374 = vmatpush2.bf16.msra.mxu0 0
      %1375 = vmatprep.subr.bf16.mxu0 0
      %1376 = vmatpush2.bf16.msra.mxu0 0
      %1377 = vmatprep.subr.bf16.mxu0 0
      %1378 = vmatpush2.bf16.msra.mxu0 0
      %1379 = vmatprep.subr.bf16.mxu0 0
      %1380 = vmatpush2.bf16.msra.mxu0 0
      %1381 = vmatprep.mubr.bf16.mxu0 0
      %1382 = vmatmul.mubr.bf16.gmra.mxu0 %v1344
      %v1383 = vpop.f32.mrf.mxu0
      %v1384 = vadd.f32 0.0, %v1383
      %v1385 = vpop.f32.mrf.mxu0
      %v1386 = vpop.f32.mrf.mxu0
      %v1387 = vpop.f32.mrf.mxu0
      %1388 = vdwg.mxu0
      %v1389 = vcombine.low %v1246, %v1338
      %v1390 = vcombine.high %v1246, %v1338
      %v1392 = vunpack.c.l.s4 1983009808
      %v1393 = vunpack.c.0.s8 %v1392
      %v1394 = vlaneseq
      %v1395 = vshrl.u32 %v1394, 7
      %v1396 = vsub.s32 %v1393, %v1395
      %v1397 = vrot.slane %v1389, %v1396
      %v1399 = vunpack.c.l.s4 1983009808
      %v1400 = vunpack.c.0.s8 %v1399
      %v1401 = vlaneseq
      %v1402 = vshrl.u32 %v1401, 7
      %v1403 = vsub.s32 %v1400, %v1402
      %v1404 = vrot.slane %v1390, %v1403
      %v1405 = vcombine.low %v1292, %v1384
      %v1406 = vcombine.high %v1292, %v1384
      %v1408 = vunpack.c.l.s4 1983009808
      %v1409 = vunpack.c.0.s8 %v1408
      %v1410 = vlaneseq
      %v1411 = vshrl.u32 %v1410, 7
      %v1412 = vsub.s32 %v1409, %v1411
      %v1413 = vrot.slane %v1405, %v1412
      %v1415 = vunpack.c.l.s4 1983009808
      %v1416 = vunpack.c.0.s8 %v1415
      %v1417 = vlaneseq
      %v1418 = vshrl.u32 %v1417, 7
      %v1419 = vsub.s32 %v1416, %v1418
      %v1420 = vrot.slane %v1406, %v1419
      %v1421 = vcombine.low %v1397, %v1413
      %v1422 = vcombine.high %v1397, %v1413
      %v1424 = vunpack.c.l.s4 1934713408
      %v1425 = vunpack.c.0.s8 %v1424
      %v1426 = vlaneseq
      %v1427 = vshrl.u32 %v1426, 7
      %v1428 = vsub.s32 %v1425, %v1427
      %v1429 = vrot.slane %v1421, %v1428
      %v1431 = vunpack.c.l.s4 1934713408
      %v1432 = vunpack.c.0.s8 %v1431
      %v1433 = vlaneseq
      %v1434 = vshrl.u32 %v1433, 7
      %v1435 = vsub.s32 %v1432, %v1434
      %v1436 = vrot.slane %v1422, %v1435
      %v1437 = vcombine.low %v1404, %v1420
      %v1438 = vcombine.high %v1404, %v1420
      %v1440 = vunpack.c.l.s4 1934713408
      %v1441 = vunpack.c.0.s8 %v1440
      %v1442 = vlaneseq
      %v1443 = vshrl.u32 %v1442, 7
      %v1444 = vsub.s32 %v1441, %v1443
      %v1445 = vrot.slane %v1437, %v1444
      %v1447 = vunpack.c.l.s4 1934713408
      %v1448 = vunpack.c.0.s8 %v1447
      %v1449 = vlaneseq
      %v1450 = vshrl.u32 %v1449, 7
      %v1451 = vsub.s32 %v1448, %v1450
      %v1452 = vrot.slane %v1438, %v1451
      %v1453 = vcombine.high %v1429, 0.0
      %v1454 = vcombine.high %v1436, 0.0
      %v1455 = vcombine.high %v1445, 0.0
      %v1456 = vcombine.high %v1452, 0.0
      %v1457 = vcombine.low %v1429, %v1436
      %v1459 = vunpack.c.l.s4 1983009808
      %v1460 = vunpack.c.0.s8 %v1459
      %v1461 = vlaneseq
      %v1462 = vshrl.u32 %v1461, 7
      %v1463 = vsub.s32 %v1460, %v1462
      %v1464 = vrot.slane %v1457, %v1463
      %v1465 = vcombine.low %v1453, %v1454
      %v1467 = vunpack.c.l.s4 1983009808
      %v1468 = vunpack.c.0.s8 %v1467
      %v1469 = vlaneseq
      %v1470 = vshrl.u32 %v1469, 7
      %v1471 = vsub.s32 %v1468, %v1470
      %v1472 = vrot.slane %v1465, %v1471
      %v1473 = vcombine.low %v1445, %v1452
      %v1475 = vunpack.c.l.s4 1983009808
      %v1476 = vunpack.c.0.s8 %v1475
      %v1477 = vlaneseq
      %v1478 = vshrl.u32 %v1477, 7
      %v1479 = vsub.s32 %v1476, %v1478
      %v1480 = vrot.slane %v1473, %v1479
      %v1481 = vcombine.low %v1455, %v1456
      %v1483 = vunpack.c.l.s4 1983009808
      %v1484 = vunpack.c.0.s8 %v1483
      %v1485 = vlaneseq
      %v1486 = vshrl.u32 %v1485, 7
      %v1487 = vsub.s32 %v1484, %v1486
      %v1488 = vrot.slane %v1481, %v1487
      %v1489 = vcombine.low %v1464, %v1472
      %v1490 = vcombine.high %v1464, %v1472
      %v1492 = vunpack.c.l.s4 1934713408
      %v1493 = vunpack.c.0.s8 %v1492
      %v1494 = vlaneseq
      %v1495 = vshrl.u32 %v1494, 7
      %v1496 = vsub.s32 %v1493, %v1495
      %v1497 = vrot.slane %v1489, %v1496
      %v1499 = vunpack.c.l.s4 1934713408
      %v1500 = vunpack.c.0.s8 %v1499
      %v1501 = vlaneseq
      %v1502 = vshrl.u32 %v1501, 7
      %v1503 = vsub.s32 %v1500, %v1502
      %v1504 = vrot.slane %v1490, %v1503
      %v1505 = vcombine.low %v1480, %v1488
      %v1506 = vcombine.high %v1480, %v1488
      %v1508 = vunpack.c.l.s4 1934713408
      %v1509 = vunpack.c.0.s8 %v1508
      %v1510 = vlaneseq
      %v1511 = vshrl.u32 %v1510, 7
      %v1512 = vsub.s32 %v1509, %v1511
      %v1513 = vrot.slane %v1505, %v1512
      %v1515 = vunpack.c.l.s4 1934713408
      %v1516 = vunpack.c.0.s8 %v1515
      %v1517 = vlaneseq
      %v1518 = vshrl.u32 %v1517, 7
      %v1519 = vsub.s32 %v1516, %v1518
      %v1520 = vrot.slane %v1506, %v1519
      %v1521 = vcombine.low %v1497, %v1513
      %v1522 = vcombine.high %v1497, %v1513
      %v1523 = vcombine.low %v1504, %v1520
      %v1524 = vcombine.high %v1504, %v1520
      %1526 = vrot.lane.b32.xlu0 %v1522, 8
      %v1527 = vpop.permute.xlu0 %1526
      %1530 = vrot.lane.b32.xlu0 %v1523, 16
      %v1531 = vpop.permute.xlu0 %1530
      %1534 = vrot.lane.b32.xlu0 %v1524, 24
      %v1535 = vpop.permute.xlu0 %1534
      %v1537 = vsel %vm965, %v1521, %v1527
      %vm1538 = vcmask 130048
      %v1539 = vsel %vm1538, %v1537, %v1531
      %vm1540 = vcmask 195584
      %v1541 = vsel %vm1540, %v1539, %v1535
      %v1542 = vpack.c.bf16 %v1541, %v1541
      %v1543 = vld [vmem:[%s3] sm:$0xf]
      %v1544 = vld [vmem:[%s3 + $0x4] sm:$0xf]
      %v1545 = vld [vmem:[%s3 + $0x8] sm:$0xf]
      %v1546 = vld [vmem:[%s3 + $0xc] sm:$0xf]
      %v1547 = vld [vmem:[%s4] sm:$0x1]
      %v1549 = vlaneseq
      %v1550 = vshrl.u32 %v1549, 7
      %v1551 = vsub.s32 0, %v1550
      %v1552 = vrot.slane %v1547, %v1551
      %v1558 = vunpack.c.l.b16 %v1543
      %v1559 = vunpack.c.l.b16 %v1544
      %v1560 = vunpack.c.l.b16 %v1545
      %v1561 = vunpack.c.l.b16 %v1546
      %v1562 = vpack.c.b16 %v1559, %v1558
      %v1563 = vpack.c.b16 %v1561, %v1560
      %v1567 = vsel %vm462, %v1542, 0
      %1569 = vmatprep.subr.bf16.mxu0 0
      %1570 = vmatpush1.bf16.msra.mxu0 0
      %1571 = vmatprep.subr.bf16.mxu0 0
      %1572 = vmatpush1.bf16.msra.mxu0 0
      %1573 = vmatprep.subr.bf16.mxu0 0
      %1574 = vmatpush1.bf16.msra.mxu0 0
      %1575 = vmatprep.subr.bf16.mxu0 0
      %1576 = vmatpush1.bf16.msra.mxu0 0
      %1577 = vmatprep.subr.bf16.mxu0 0
      %1578 = vmatpush1.bf16.msra.mxu0 0
      %1579 = vmatprep.subr.bf16.mxu0 0
      %1580 = vmatpush1.bf16.msra.mxu0 0
      %1581 = vmatprep.subr.bf16.mxu0 0
      %1582 = vmatpush1.bf16.msra.mxu0 %v1563
      %1583 = vmatprep.subr.bf16.mxu0 0
      %1584 = vmatpush1.bf16.msra.mxu0 %v1562
      %1585 = vmatprep.subr.bf16.mxu0 0
      %1586 = vmatpush2.bf16.msra.mxu0 0
      %1587 = vmatprep.subr.bf16.mxu0 0
      %1588 = vmatpush2.bf16.msra.mxu0 0
      %1589 = vmatprep.subr.bf16.mxu0 0
      %1590 = vmatpush2.bf16.msra.mxu0 0
      %1591 = vmatprep.subr.bf16.mxu0 0
      %1592 = vmatpush2.bf16.msra.mxu0 0
      %1593 = vmatprep.subr.bf16.mxu0 0
      %1594 = vmatpush2.bf16.msra.mxu0 0
      %1595 = vmatprep.subr.bf16.mxu0 0
      %1596 = vmatpush2.bf16.msra.mxu0 0
      %1597 = vmatprep.subr.bf16.mxu0 0
      %1598 = vmatpush2.bf16.msra.mxu0 0
      %1599 = vmatprep.subr.bf16.mxu0 0
      %1600 = vmatpush2.bf16.msra.mxu0 0
      %1601 = vmatprep.mubr.bf16.mxu0 0
      %1602 = vmatmul.mubr.bf16.gmra.mxu0 %v1567
      %v1603 = vpop.f32.mrf.mxu0
      %v1604 = vadd.f32 %v1552, %v1603
      %v1605 = vpop.f32.mrf.mxu0
      %v1606 = vpop.f32.mrf.mxu0
      %v1607 = vpop.f32.mrf.mxu0
      %1608 = vdwg.mxu0
      %v1609 = vadd.f32 %v437, %v1604
      %v1610 = vld [vmem:[%s9] sm:$0x1]
      %v1611 = vld [vmem:[%s10] sm:$0x1]
      %v1612 = vsel %vm462, %v1609, 0.0
      %1613 = vadd.xlane.f32.xlu0 %v1612
      %v1614 = vpop.xlane.xlu0 %1613
      %v1615 = vrcp.pop 32.0
      %v1616 = vmul.f32 %v1614, %v1615
      %v1617 = vsub.f32 %v1609, %v1616
      %v1618 = vmul.f32 %v1617, %v1617
      %v1619 = vsel %vm462, %v1618, 0.0
      %1620 = vadd.xlane.f32.xlu0 %v1619
      %v1621 = vpop.xlane.xlu0 %1620
      %v1622 = vmul.f32 %v1621, %v1615
      %v1623 = vadd.f32 %v1622, 1e-05
      %v1624 = vrsqrt.pop %v1623
      %v1625 = vmul.f32 %v1617, %v1624
      %v1627 = vlaneseq
      %v1628 = vshrl.u32 %v1627, 7
      %v1629 = vsub.s32 0, %v1628
      %v1630 = vrot.slane %v1610, %v1629
      %v1632 = vmul.f32 %v1625, %v1630
      %v1634 = vlaneseq
      %v1635 = vshrl.u32 %v1634, 7
      %v1636 = vsub.s32 0, %v1635
      %v1637 = vrot.slane %v1611, %v1636
      %v1639 = vadd.f32 %v1632, %v1637
      %v1640 = vpack.c.bf16 %v1639, %v1639
      %v1641 = vld [vmem:[%s5] sm:$0xf]
      %v1642 = vld [vmem:[%s5 + $0x4] sm:$0xf]
      %v1643 = vld [vmem:[%s5 + $0x8] sm:$0xf]
      %v1644 = vld [vmem:[%s5 + $0xc] sm:$0xf]
      %v1645 = vld [vmem:[%s6] sm:$0x1]
      %v1647 = vlaneseq
      %v1648 = vshrl.u32 %v1647, 7
      %v1649 = vsub.s32 0, %v1648
      %v1650 = vrot.slane %v1645, %v1649
      %v1656 = vunpack.c.l.b16 %v1641
      %v1657 = vunpack.c.l.b16 %v1642
      %v1658 = vunpack.c.l.b16 %v1643
      %v1659 = vunpack.c.l.b16 %v1644
      %v1660 = vpack.c.b16 %v1657, %v1656
      %v1661 = vpack.c.b16 %v1659, %v1658
      %v1665 = vsel %vm462, %v1640, 0
      %1667 = vmatprep.subr.bf16.mxu0 0
      %1668 = vmatpush1.bf16.msra.mxu0 0
      %1669 = vmatprep.subr.bf16.mxu0 0
      %1670 = vmatpush1.bf16.msra.mxu0 0
      %1671 = vmatprep.subr.bf16.mxu0 0
      %1672 = vmatpush1.bf16.msra.mxu0 0
      %1673 = vmatprep.subr.bf16.mxu0 0
      %1674 = vmatpush1.bf16.msra.mxu0 0
      %1675 = vmatprep.subr.bf16.mxu0 0
      %1676 = vmatpush1.bf16.msra.mxu0 0
      %1677 = vmatprep.subr.bf16.mxu0 0
      %1678 = vmatpush1.bf16.msra.mxu0 0
      %1679 = vmatprep.subr.bf16.mxu0 0
      %1680 = vmatpush1.bf16.msra.mxu0 %v1661
      %1681 = vmatprep.subr.bf16.mxu0 0
      %1682 = vmatpush1.bf16.msra.mxu0 %v1660
      %1683 = vmatprep.subr.bf16.mxu0 0
      %1684 = vmatpush2.bf16.msra.mxu0 0
      %1685 = vmatprep.subr.bf16.mxu0 0
      %1686 = vmatpush2.bf16.msra.mxu0 0
      %1687 = vmatprep.subr.bf16.mxu0 0
      %1688 = vmatpush2.bf16.msra.mxu0 0
      %1689 = vmatprep.subr.bf16.mxu0 0
      %1690 = vmatpush2.bf16.msra.mxu0 0
      %1691 = vmatprep.subr.bf16.mxu0 0
      %1692 = vmatpush2.bf16.msra.mxu0 0
      %1693 = vmatprep.subr.bf16.mxu0 0
      %1694 = vmatpush2.bf16.msra.mxu0 0
      %1695 = vmatprep.subr.bf16.mxu0 0
      %1696 = vmatpush2.bf16.msra.mxu0 0
      %1697 = vmatprep.subr.bf16.mxu0 0
      %1698 = vmatpush2.bf16.msra.mxu0 0
      %1699 = vmatprep.mubr.bf16.mxu0 0
      %1700 = vmatmul.mubr.bf16.gmra.mxu0 %v1665
      %v1701 = vpop.f32.mrf.mxu0
      %v1702 = vadd.f32 %v1650, %v1701
      %v1703 = vpop.f32.mrf.mxu0
      %v1704 = vpop.f32.mrf.mxu0
      %v1705 = vpop.f32.mrf.mxu0
      %1706 = vdwg.mxu0
      %v1707 = vmax.f32 %v1702, 0.0
      %v1708 = vpack.c.bf16 %v1707, %v1707
      %v1709 = vld [vmem:[%s7] sm:$0xf]
      %v1710 = vld [vmem:[%s7 + $0x4] sm:$0xf]
      %v1711 = vld [vmem:[%s7 + $0x8] sm:$0xf]
      %v1712 = vld [vmem:[%s7 + $0xc] sm:$0xf]
      %v1713 = vld [vmem:[%s7 + $0x10] sm:$0xf]
      %v1714 = vld [vmem:[%s7 + $0x14] sm:$0xf]
      %v1715 = vld [vmem:[%s7 + $0x18] sm:$0xf]
      %v1716 = vld [vmem:[%s7 + $0x1c] sm:$0xf]
      %v1717 = vld [vmem:[%s8] sm:$0x1]
      %v1719 = vlaneseq
      %v1720 = vshrl.u32 %v1719, 7
      %v1721 = vsub.s32 0, %v1720
      %v1722 = vrot.slane %v1717, %v1721
      %v1732 = vunpack.c.l.b16 %v1709
      %v1733 = vunpack.c.l.b16 %v1710
      %v1734 = vunpack.c.l.b16 %v1711
      %v1735 = vunpack.c.l.b16 %v1712
      %v1736 = vunpack.c.l.b16 %v1713
      %v1737 = vunpack.c.l.b16 %v1714
      %v1738 = vunpack.c.l.b16 %v1715
      %v1739 = vunpack.c.l.b16 %v1716
      %v1740 = vpack.c.b16 %v1733, %v1732
      %v1741 = vpack.c.b16 %v1735, %v1734
      %v1742 = vpack.c.b16 %v1737, %v1736
      %v1743 = vpack.c.b16 %v1739, %v1738
      %vm1748 = vcmask 523264
      %v1750 = vsel %vm1748, %v1708, 0
      %1752 = vmatprep.subr.bf16.mxu0 0
      %1753 = vmatpush1.bf16.msra.mxu0 0
      %1754 = vmatprep.subr.bf16.mxu0 0
      %1755 = vmatpush1.bf16.msra.mxu0 0
      %1756 = vmatprep.subr.bf16.mxu0 0
      %1757 = vmatpush1.bf16.msra.mxu0 0
      %1758 = vmatprep.subr.bf16.mxu0 0
      %1759 = vmatpush1.bf16.msra.mxu0 0
      %1760 = vmatprep.subr.bf16.mxu0 0
      %1761 = vmatpush1.bf16.msra.mxu0 %v1743
      %1762 = vmatprep.subr.bf16.mxu0 0
      %1763 = vmatpush1.bf16.msra.mxu0 %v1742
      %1764 = vmatprep.subr.bf16.mxu0 0
      %1765 = vmatpush1.bf16.msra.mxu0 %v1741
      %1766 = vmatprep.subr.bf16.mxu0 0
      %1767 = vmatpush1.bf16.msra.mxu0 %v1740
      %1768 = vmatprep.subr.bf16.mxu0 0
      %1769 = vmatpush2.bf16.msra.mxu0 0
      %1770 = vmatprep.subr.bf16.mxu0 0
      %1771 = vmatpush2.bf16.msra.mxu0 0
      %1772 = vmatprep.subr.bf16.mxu0 0
      %1773 = vmatpush2.bf16.msra.mxu0 0
      %1774 = vmatprep.subr.bf16.mxu0 0
      %1775 = vmatpush2.bf16.msra.mxu0 0
      %1776 = vmatprep.subr.bf16.mxu0 0
      %1777 = vmatpush2.bf16.msra.mxu0 0
      %1778 = vmatprep.subr.bf16.mxu0 0
      %1779 = vmatpush2.bf16.msra.mxu0 0
      %1780 = vmatprep.subr.bf16.mxu0 0
      %1781 = vmatpush2.bf16.msra.mxu0 0
      %1782 = vmatprep.subr.bf16.mxu0 0
      %1783 = vmatpush2.bf16.msra.mxu0 0
      %1784 = vmatprep.mubr.bf16.mxu0 0
      %1785 = vmatmul.mubr.bf16.gmra.mxu0 %v1750
      %v1786 = vpop.f32.mrf.mxu0
      %v1787 = vadd.f32 %v1722, %v1786
      %v1788 = vpop.f32.mrf.mxu0
      %v1789 = vpop.f32.mrf.mxu0
      %v1790 = vpop.f32.mrf.mxu0
      %1791 = vdwg.mxu0
      %v1792 = vadd.f32 %v1639, %v1787
      %v1793 = vld [vmem:[%s11] sm:$0x1]
      %v1794 = vld [vmem:[%s12] sm:$0x1]
      %v1795 = vsel %vm462, %v1792, 0.0
      %1796 = vadd.xlane.f32.xlu0 %v1795
      %v1797 = vpop.xlane.xlu0 %1796
      %v1798 = vmul.f32 %v1797, %v1615
      %v1799 = vsub.f32 %v1792, %v1798
      %v1800 = vmul.f32 %v1799, %v1799
      %v1801 = vsel %vm462, %v1800, 0.0
      %1802 = vadd.xlane.f32.xlu0 %v1801
      %v1803 = vpop.xlane.xlu0 %1802
      %v1804 = vmul.f32 %v1803, %v1615
      %v1805 = vadd.f32 %v1804, 1e-05
      %v1806 = vrsqrt.pop %v1805
      %v1807 = vmul.f32 %v1799, %v1806
      %v1809 = vlaneseq
      %v1810 = vshrl.u32 %v1809, 7
      %v1811 = vsub.s32 0, %v1810
      %v1812 = vrot.slane %v1793, %v1811
      %v1814 = vmul.f32 %v1807, %v1812
      %v1816 = vlaneseq
      %v1817 = vshrl.u32 %v1816, 7
      %v1818 = vsub.s32 0, %v1817
      %v1819 = vrot.slane %v1794, %v1818
      %v1821 = vadd.f32 %v1814, %v1819
      %1822 = vst.msk [vmem:[%s435] sm:$0xff] %vm462, %v1821
      %p1823 = scmp.lt.s32.totalorder %s24, 1
      %s1824 = scalar_select %p1823, %s24, 1
      %s1825 = smul.addr %s1824, 8
      %s1826 = scalar_lea.vmem %s13, %s1825
      // Predicated region
      $region73: #{transformer_decoder_only_forward.3} parent=71 // pred_check
        %p1827 = pneg %p320
      $region74: #{transformer_decoder_only_forward.3} parent=71 // pred_check_branch
        %1829 = sbr.rel (%p1827) target = $region76
      $region75: #{transformer_decoder_only_forward.3} parent=71 // pred_region
        _
      $region76: #{transformer_decoder_only_forward.3} parent=71 // pred_fallthru
        _
    $region72: #{transformer_decoder_only_forward.3} parent=5 // pred_fallthru
      _
    %p1830 = scmp.le.s32.totalorder 2, %s19
    // Predicated region
    $region77: #{transformer_decoder_only_forward.3} parent=5 // pred_check
      %p1831 = pneg %p1830
    $region78: #{transformer_decoder_only_forward.3} parent=5 // pred_check_branch
      %1833 = sbr.rel (%p1831) target = $region80
    $region79: #{transformer_decoder_only_forward.3} parent=5 // pred_region
      %s1834 = ssub.s32 %s19, 2
      // Predicated region
      $region81: #{transformer_decoder_only_forward.3} parent=79 // pred_check
        %p1835 = pneg %p326
      $region82: #{transformer_decoder_only_forward.3} parent=79 // pred_check_branch
        %1837 = sbr.rel (%p1835) target = $region84
      $region83: #{transformer_decoder_only_forward.3} parent=79 // pred_region
        %p1838 = scmp.lt.s32.totalorder %s25, 1
        %s1839 = scalar_select %p1838, %s25, 1
        %s1840 = smul.addr %s1839, 8
        %s1841 = scalar_lea.vmem %s13, %s1840
      $region84: #{transformer_decoder_only_forward.3} parent=79 // pred_fallthru
        _
    $region80: #{transformer_decoder_only_forward.3} parent=5 // pred_fallthru
      _
  $region6: #{transformer_decoder_only_forward.3} parent=0 // loop_footer
    %s23 = sadd.s32 1, %s19
  $region7: #{transformer_decoder_only_forward.3} parent=0 // loop_footer_branch
    %18 = sbr.rel target = $region3
  $region8: #{transformer_decoder_only_forward.3} parent=0 // loop_exit
    _

</llo_original>
